<compile_context>
chip_gen: v5e
topology: v5e:2x2
jax: 0.10.0
libtpu: 0.0.40
codegen_flags: <defaults>
</compile_context>

<pallas_src>
import functools
import math

import jax
import jax.numpy as jnp
from jax import lax
from jax.experimental import pallas as pl
from jax.experimental.pallas import tpu as pltpu

PATCH = 4
HIDDEN = 32
NUM_HEADS = 2
HEAD_DIM = HIDDEN // NUM_HEADS
MLP_DIM = 64
LORA_R = 16
LORA_ALPHA = 32.0
LORA_SCALING = LORA_ALPHA / LORA_R  # MultiLoRALayer.scaling
LN_EPS = 1e-12


# ------------------------------ fused kernel ------------------------------

def _layer_norm(x, g, b):
    mu = jnp.mean(x, axis=-1, keepdims=True)
    var = jnp.mean(jnp.square(x - mu), axis=-1, keepdims=True)
    return (x - mu) * lax.rsqrt(var + LN_EPS) * g + b


def _vit_block_kernel(p_ref, off_ref, wpatch_ref, ln_ref,
                      wqkvd_ref, bqkvd_ref, ublk_ref,
                      wprojd_ref, bprojd_ref, uproj_ref,
                      wfc1_ref, bfc1_ref, wfc2_ref, bfc2_ref,
                      o_ref, *, scale):
    f32 = jnp.float32
    H, R, HD = HIDDEN, LORA_R, HEAD_DIM

    # Patch embedding; cls row is a zero patch, and (cls_token + pos_embed /
    # patch bias + pos_embed) are pre-folded into off_ref.
    x0 = jnp.dot(p_ref[...], wpatch_ref[...], preferred_element_type=f32) + off_ref[...]

    # LN1 -> fused [Wq|Wk|Wv|Aq|Ak|Av] matmul (144 output lanes, > 1 vreg wide).
    h1 = _layer_norm(x0, ln_ref[0:1, :], ln_ref[1:2, :])
    qkvd = jnp.dot(h1, wqkvd_ref[...], preferred_element_type=f32) + bqkvd_ref[...]
    # Block-diagonal, pre-scaled LoRA-up applied to the 48-wide down block in
    # one matmul -> qkv = base + up(down(x)) * scaling   (up is zero-init).
    qkv = qkvd[:, :3 * H] + jnp.dot(qkvd[:, 3 * H:], ublk_ref[...],
                                    preferred_element_type=f32)

    # Attention: both heads handled inside this single grid step.  The per-head
    # context is accumulated straight into the fused proj(+LoRA-down) matmul,
    # so no head concatenation / transpose is needed.
    pd = bprojd_ref[...]                                 # (1, H + R), broadcasts
    for hd in range(NUM_HEADS):
        q = qkv[:, hd * HD:(hd + 1) * HD]
        k = qkv[:, H + hd * HD:H + (hd + 1) * HD]
        v = qkv[:, 2 * H + hd * HD:2 * H + (hd + 1) * HD]
        s = jnp.einsum("qd,kd->qk", q, k, preferred_element_type=f32) * scale
        s = s - jnp.max(s, axis=-1, keepdims=True)
        p = jnp.exp(s)
        p = p * pl.reciprocal(jnp.sum(p, axis=-1, keepdims=True), approx=True)
        ctx_h = jnp.dot(p, v, preferred_element_type=f32)          # (T, HD)
        pd = pd + jnp.dot(ctx_h, wprojd_ref[hd * HD:(hd + 1) * HD, :],
                          preferred_element_type=f32)
    proj = pd[:, :H] + jnp.dot(pd[:, H:], uproj_ref[...], preferred_element_type=f32)
    x1 = x0 + proj

    # LN2 -> MLP (gelu) -> residual.
    h2 = _layer_norm(x1, ln_ref[2:3, :], ln_ref[3:4, :])
    m = jax.nn.gelu(jnp.dot(h2, wfc1_ref[...], preferred_element_type=f32)
                    + bfc1_ref[...])
    m = jnp.dot(m, wfc2_ref[...], preferred_element_type=f32) + bfc2_ref[...]
    x2 = x1 + m

    # Final LN -> single (lane-sparse, 32-wide) HBM store.
    o_ref[...] = _layer_norm(x2, ln_ref[4:5, :], ln_ref[5:6, :]).astype(o_ref.dtype)


# ----------------------------- wrapper (glue) -----------------------------

def vit_forward_fused(fp, pixel_values):
    """pixel_values: NCHW.  Returns last_hidden_state (B, T, HIDDEN)."""
    B, C, Himg, Wimg = pixel_values.shape
    P = PATCH
    nph, npw = Himg // P, Wimg // P
    num_patches = nph * npw
    T = num_patches + 1
    patch_dim = C * P * P

    # Conv2d(kernel=P, stride=P) patch embedding == unfold + matmul; the unfold
    # is pure layout glue here, the matmul happens inside the fused kernel.
    x = pixel_values.reshape(B, C, nph, P, npw, P)
    x = x.transpose(0, 2, 4, 1, 3, 5).reshape(B, num_patches, patch_dim)
    patches = jnp.concatenate(
        [jnp.zeros((B, 1, patch_dim), x.dtype), x], axis=1)   # zero cls slot

    kernel = functools.partial(_vit_block_kernel, scale=1.0 / math.sqrt(HEAD_DIM))

    def const(shape):
        nd = len(shape)
        return pl.BlockSpec(shape, lambda i, _nd=nd: (0,) * _nd)

    qkvd_w = 3 * HIDDEN + 3 * LORA_R      # 144
    projd_w = HIDDEN + LORA_R             # 48

    return pl.pallas_call(
        kernel,
        out_shape=jax.ShapeDtypeStruct((B, T, HIDDEN), pixel_values.dtype),
        grid=(B,),
        in_specs=[
            pl.BlockSpec((None, T, patch_dim), lambda i: (i, 0, 0)),  # patches
            const((T, HIDDEN)),            # off (cls/pos/bias folded)
            const((patch_dim, HIDDEN)),    # patch-embed weight
            const((6, HIDDEN)),            # [ln1_g, ln1_b, ln2_g, ln2_b, lnf_g, lnf_b]
            const((HIDDEN, qkvd_w)),       # fused [Wq|Wk|Wv|Aq|Ak|Av]
            const((1, qkvd_w)),            # fused qkv bias (zeros on down part)
            const((3 * LORA_R, 3 * HIDDEN)),  # block-diag scaled LoRA-up
            const((HIDDEN, projd_w)),      # fused [Wproj|Aproj]
            const((1, projd_w)),           # fused proj bias
            const((LORA_R, HIDDEN)),       # scaled proj LoRA-up
            const((HIDDEN, MLP_DIM)),      # fc1
            const((1, MLP_DIM)),
            const((MLP_DIM, HIDDEN)),      # fc2
            const((1, HIDDEN)),
        ],
        out_specs=pl.BlockSpec((None, T, HIDDEN), lambda i: (i, 0, 0)),
        compiler_params=pltpu.CompilerParams(
            dimension_semantics=("parallel",)),   # one image per TC on v7x
    )(patches, fp["off"], fp["wpatch"], fp["ln"],
      fp["wqkvd"], fp["bqkvd"], fp["ublk"],
      fp["wprojd"], fp["bprojd"], fp["uproj"],
      fp["wfc1"], fp["bfc1"], fp["wfc2"], fp["bfc2"])


# --------------------------- parameter init (glue) ---------------------------

def init_params(key, img_size=16, in_chans=3):
    patch_dim = in_chans * PATCH * PATCH
    num_patches = (img_size // PATCH) ** 2
    seq_len = num_patches + 1
    keys = iter(jax.random.split(key, 32))

    def linear_init(k, fan_in, fan_out):
        k1, k2 = jax.random.split(k)
        bound = 1.0 / math.sqrt(fan_in)
        w_t = jax.random.uniform(k1, (fan_in, fan_out), jnp.float32, -bound, bound)
        b = jax.random.uniform(k2, (fan_out,), jnp.float32, -bound, bound)
        return w_t, b

    def lora_init(k, fan_in, fan_out, r):
        # kaiming_uniform_(a=sqrt(5)) -> bound = 1/sqrt(fan_in); up is zero-init
        bound = 1.0 / math.sqrt(fan_in)
        a_t = jax.random.uniform(k, (fan_in, r), jnp.float32, -bound, bound)
        u_t = jnp.zeros((r, fan_out), jnp.float32)
        return a_t, u_t

    p = {}
    p["patch_w_t"], p["patch_b"] = linear_init(next(keys), patch_dim, HIDDEN)
    p["cls_token"] = 0.02 * jax.random.normal(next(keys), (1, 1, HIDDEN), jnp.float32)
    p["pos_embed"] = 0.02 * jax.random.normal(next(keys), (1, seq_len, HIDDEN),
                                              jnp.float32)

    for name in ("query", "key", "value", "proj"):   # adapter_config.target_modules
        w_t, b = linear_init(next(keys), HIDDEN, HIDDEN)
        a_t, u_t = lora_init(next(keys), HIDDEN, HIDDEN, LORA_R)
        p[name] = {"w_t": w_t, "b": b, "lora": {"default": (a_t, u_t)}}

    p["fc1_w_t"], p["fc1_b"] = linear_init(next(keys), HIDDEN, MLP_DIM)
    p["fc2_w_t"], p["fc2_b"] = linear_init(next(keys), MLP_DIM, HIDDEN)
    for ln in ("ln1", "ln2", "lnf"):
        p[f"{ln}_g"] = jnp.ones((HIDDEN,), jnp.float32)
        p[f"{ln}_b"] = jnp.zeros((HIDDEN,), jnp.float32)
    return p


def prepare_fused_params(p, adapter_name="default"):
    """One-time weight fusion: concat base+LoRA-down, block-diag scaled LoRA-up,
    fold LORA_SCALING / cls+pos+bias, stack LN params."""
    H, R = HIDDEN, LORA_R

    def lora(name):
        a_t, u_t = p[name]["lora"][adapter_name]
        return a_t, u_t * LORA_SCALING          # scaling folded here, not in-kernel

    aq, uq = lora("query")
    ak, uk = lora("key")
    av, uv = lora("value")
    ap, up = lora("proj")

    wqkvd = jnp.concatenate([p["query"]["w_t"], p["key"]["w_t"], p["value"]["w_t"],
                             aq, ak, av], axis=1)                       # (32, 144)
    bqkvd = jnp.concatenate([p["query"]["b"], p["key"]["b"], p["value"]["b"],
                             jnp.zeros((3 * R,), jnp.float32)]).reshape(1, -1)

    ublk = jnp.zeros((3 * R, 3 * H), jnp.float32)                       # (48, 96)
    ublk = ublk.at[0:R, 0:H].set(uq)
    ublk = ublk.at[R:2 * R, H:2 * H].set(uk)
    ublk = ublk.at[2 * R:3 * R, 2 * H:3 * H].set(uv)

    wprojd = jnp.concatenate([p["proj"]["w_t"], ap], axis=1)            # (32, 48)
    bprojd = jnp.concatenate([p["proj"]["b"],
                              jnp.zeros((R,), jnp.float32)]).reshape(1, -1)

    off = jnp.concatenate(
        [p["cls_token"][0, 0:1, :] + p["pos_embed"][0, 0:1, :],
         p["pos_embed"][0, 1:, :] + p["patch_b"][None, :]], axis=0)     # (T, 32)

    ln = jnp.stack([p["ln1_g"], p["ln1_b"], p["ln2_g"], p["ln2_b"],
                    p["lnf_g"], p["lnf_b"]], axis=0)                    # (6, 32)

    return {
        "off": off, "wpatch": p["patch_w_t"], "ln": ln,
        "wqkvd": wqkvd, "bqkvd": bqkvd, "ublk": ublk,
        "wprojd": wprojd, "bprojd": bprojd, "uproj": up,
        "wfc1": p["fc1_w_t"], "bfc1": p["fc1_b"].reshape(1, -1),
        "wfc2": p["fc2_w_t"], "bfc2": p["fc2_b"].reshape(1, -1),
    }


# ----------------------------------- main -----------------------------------

if __name__ == "__main__":
    key = jax.random.PRNGKey(0)
    k_params, k_input = jax.random.split(key)

    params = init_params(k_params, img_size=16, in_chans=3)
    pixel_values = jax.random.normal(k_input, (2, 3, 16, 16), jnp.float32)  # NCHW

    fused = prepare_fused_params(params, "default")   # one-time param prep
    fwd = jax.jit(vit_forward_fused)
    out = jax.block_until_ready(fwd(fused, pixel_values))

    assert out.shape == (2, (16 // PATCH) ** 2 + 1, HIDDEN), out.shape
    assert jnp.all(jnp.isfinite(out))
    print("KERNEL_OK")
</pallas_src>

<mosaic_0001>
module attributes {stable_mosaic.version = 11 : i64} {
  func.func @_vit_block_kernel(%arg0: i32, %arg1: memref<1x17x48xf32, #tpu.memory_space<vmem>>, %arg2: memref<17x32xf32, #tpu.memory_space<vmem>>, %arg3: memref<48x32xf32, #tpu.memory_space<vmem>>, %arg4: memref<6x32xf32, #tpu.memory_space<vmem>>, %arg5: memref<32x144xf32, #tpu.memory_space<vmem>>, %arg6: memref<1x144xf32, #tpu.memory_space<vmem>>, %arg7: memref<48x96xf32, #tpu.memory_space<vmem>>, %arg8: memref<32x48xf32, #tpu.memory_space<vmem>>, %arg9: memref<1x48xf32, #tpu.memory_space<vmem>>, %arg10: memref<16x32xf32, #tpu.memory_space<vmem>>, %arg11: memref<32x64xf32, #tpu.memory_space<vmem>>, %arg12: memref<1x64xf32, #tpu.memory_space<vmem>>, %arg13: memref<64x32xf32, #tpu.memory_space<vmem>>, %arg14: memref<1x32xf32, #tpu.memory_space<vmem>>, %arg15: memref<1x17x32xf32, #tpu.memory_space<vmem>>) attributes {dimension_semantics = [#tpu.dimension_semantics<parallel>], iteration_bounds = array<i64: 2>, scalar_prefetch = 0 : i64, scratch_operands = 0 : i64, tpu.core_type = #tpu.core_type<tc>, window_params = [{transform_indices = @transform_0, window_bounds = array<i64: 1, 17, 48>}, {pipeline_mode = #tpu.pipeline_mode<synchronous>, transform_indices = @transform_1, window_bounds = array<i64: 17, 32>}, {pipeline_mode = #tpu.pipeline_mode<synchronous>, transform_indices = @transform_2, window_bounds = array<i64: 48, 32>}, {pipeline_mode = #tpu.pipeline_mode<synchronous>, transform_indices = @transform_3, window_bounds = array<i64: 6, 32>}, {pipeline_mode = #tpu.pipeline_mode<synchronous>, transform_indices = @transform_4, window_bounds = array<i64: 32, 144>}, {pipeline_mode = #tpu.pipeline_mode<synchronous>, transform_indices = @transform_5, window_bounds = array<i64: 1, 144>}, {pipeline_mode = #tpu.pipeline_mode<synchronous>, transform_indices = @transform_6, window_bounds = array<i64: 48, 96>}, {pipeline_mode = #tpu.pipeline_mode<synchronous>, transform_indices = @transform_7, window_bounds = array<i64: 32, 48>}, {pipeline_mode = #tpu.pipeline_mode<synchronous>, transform_indices = @transform_8, window_bounds = array<i64: 1, 48>}, {pipeline_mode = #tpu.pipeline_mode<synchronous>, transform_indices = @transform_9, window_bounds = array<i64: 16, 32>}, {pipeline_mode = #tpu.pipeline_mode<synchronous>, transform_indices = @transform_10, window_bounds = array<i64: 32, 64>}, {pipeline_mode = #tpu.pipeline_mode<synchronous>, transform_indices = @transform_11, window_bounds = array<i64: 1, 64>}, {pipeline_mode = #tpu.pipeline_mode<synchronous>, transform_indices = @transform_12, window_bounds = array<i64: 64, 32>}, {pipeline_mode = #tpu.pipeline_mode<synchronous>, transform_indices = @transform_13, window_bounds = array<i64: 1, 32>}, {transform_indices = @transform_14, window_bounds = array<i64: 1, 17, 32>}]} {
    %c0 = arith.constant 0 : index
    %c0_0 = arith.constant 0 : index
    %c0_1 = arith.constant 0 : index
    %0 = vector.load %arg1[%c0, %c0_0, %c0_1] : memref<1x17x48xf32, #tpu.memory_space<vmem>>, vector<1x17x48xf32>
    %1 = vector.shape_cast %0 : vector<1x17x48xf32> to vector<17x48xf32>
    %c0_2 = arith.constant 0 : index
    %c0_3 = arith.constant 0 : index
    %2 = vector.load %arg3[%c0_2, %c0_3] : memref<48x32xf32, #tpu.memory_space<vmem>>, vector<48x32xf32>
    %cst = arith.constant dense<0.000000e+00> : vector<17x32xf32>
    %3 = tpu.matmul %1, %2, %cst {dimension_numbers = #tpu.dot_dimension_numbers<[1], [0], [0], [1], [0, 0, 1, 1], [], []>} : vector<17x48xf32>, vector<48x32xf32>, vector<17x32xf32> -> vector<17x32xf32>
    %c0_4 = arith.constant 0 : index
    %c0_5 = arith.constant 0 : index
    %4 = vector.load %arg2[%c0_4, %c0_5] : memref<17x32xf32, #tpu.memory_space<vmem>>, vector<17x32xf32>
    %5 = arith.addf %3, %4 : vector<17x32xf32>
    %c0_6 = arith.constant 0 : index
    %c0_7 = arith.constant 0 : index
    %6 = vector.load %arg4[%c0_6, %c0_7] : memref<6x32xf32, #tpu.memory_space<vmem>>, vector<1x32xf32>
    %c1 = arith.constant 1 : index
    %c0_8 = arith.constant 0 : index
    %7 = vector.load %arg4[%c1, %c0_8] : memref<6x32xf32, #tpu.memory_space<vmem>>, vector<1x32xf32>
    %cst_9 = arith.constant dense<0.000000e+00> : vector<17xf32>
    %8 = vector.multi_reduction <add>, %5, %cst_9 [1] : vector<17x32xf32> to vector<17xf32>
    %9 = vector.shape_cast %8 : vector<17xf32> to vector<17x1xf32>
    %cst_10 = arith.constant 3.200000e+01 : f32
    %10 = vector.broadcast %cst_10 : f32 to vector<17x1xf32>
    %11 = arith.divf %9, %10 : vector<17x1xf32>
    %12 = vector.broadcast %11 : vector<17x1xf32> to vector<17x32xf32>
    %13 = arith.subf %5, %12 : vector<17x32xf32>
    %14 = arith.mulf %13, %13 : vector<17x32xf32>
    %cst_11 = arith.constant dense<0.000000e+00> : vector<17xf32>
    %15 = vector.multi_reduction <add>, %14, %cst_11 [1] : vector<17x32xf32> to vector<17xf32>
    %16 = vector.shape_cast %15 : vector<17xf32> to vector<17x1xf32>
    %cst_12 = arith.constant 3.200000e+01 : f32
    %17 = vector.broadcast %cst_12 : f32 to vector<17x1xf32>
    %18 = arith.divf %16, %17 : vector<17x1xf32>
    %19 = vector.broadcast %11 : vector<17x1xf32> to vector<17x32xf32>
    %20 = arith.subf %5, %19 : vector<17x32xf32>
    %cst_13 = arith.constant 9.99999996E-13 : f32
    %21 = vector.broadcast %cst_13 : f32 to vector<17x1xf32>
    %22 = arith.addf %18, %21 : vector<17x1xf32>
    %23 = math.rsqrt %22 : vector<17x1xf32>
    %24 = vector.broadcast %23 : vector<17x1xf32> to vector<17x32xf32>
    %25 = arith.mulf %20, %24 : vector<17x32xf32>
    %26 = vector.broadcast %6 : vector<1x32xf32> to vector<17x32xf32>
    %27 = arith.mulf %25, %26 : vector<17x32xf32>
    %28 = vector.broadcast %7 : vector<1x32xf32> to vector<17x32xf32>
    %29 = arith.addf %27, %28 : vector<17x32xf32>
    %c0_14 = arith.constant 0 : index
    %c0_15 = arith.constant 0 : index
    %30 = vector.load %arg5[%c0_14, %c0_15] : memref<32x144xf32, #tpu.memory_space<vmem>>, vector<32x144xf32>
    %cst_16 = arith.constant dense<0.000000e+00> : vector<17x144xf32>
    %31 = tpu.matmul %29, %30, %cst_16 {dimension_numbers = #tpu.dot_dimension_numbers<[1], [0], [0], [1], [0, 0, 1, 1], [], []>} : vector<17x32xf32>, vector<32x144xf32>, vector<17x144xf32> -> vector<17x144xf32>
    %c0_17 = arith.constant 0 : index
    %c0_18 = arith.constant 0 : index
    %32 = vector.load %arg6[%c0_17, %c0_18] : memref<1x144xf32, #tpu.memory_space<vmem>>, vector<1x144xf32>
    %33 = vector.broadcast %32 : vector<1x144xf32> to vector<17x144xf32>
    %34 = arith.addf %31, %33 : vector<17x144xf32>
    %35 = vector.extract_strided_slice %34 {offsets = [0, 0], sizes = [17, 96], strides = [1, 1]} : vector<17x144xf32> to vector<17x96xf32>
    %36 = vector.extract_strided_slice %34 {offsets = [0, 96], sizes = [17, 48], strides = [1, 1]} : vector<17x144xf32> to vector<17x48xf32>
    %c0_19 = arith.constant 0 : index
    %c0_20 = arith.constant 0 : index
    %37 = vector.load %arg7[%c0_19, %c0_20] : memref<48x96xf32, #tpu.memory_space<vmem>>, vector<48x96xf32>
    %cst_21 = arith.constant dense<0.000000e+00> : vector<17x96xf32>
    %38 = tpu.matmul %36, %37, %cst_21 {dimension_numbers = #tpu.dot_dimension_numbers<[1], [0], [0], [1], [0, 0, 1, 1], [], []>} : vector<17x48xf32>, vector<48x96xf32>, vector<17x96xf32> -> vector<17x96xf32>
    %39 = arith.addf %35, %38 : vector<17x96xf32>
    %c0_22 = arith.constant 0 : index
    %c0_23 = arith.constant 0 : index
    %40 = vector.load %arg9[%c0_22, %c0_23] : memref<1x48xf32, #tpu.memory_space<vmem>>, vector<1x48xf32>
    %41 = vector.extract_strided_slice %39 {offsets = [0, 0], sizes = [17, 16], strides = [1, 1]} : vector<17x96xf32> to vector<17x16xf32>
    %42 = vector.extract_strided_slice %39 {offsets = [0, 32], sizes = [17, 16], strides = [1, 1]} : vector<17x96xf32> to vector<17x16xf32>
    %43 = vector.extract_strided_slice %39 {offsets = [0, 64], sizes = [17, 16], strides = [1, 1]} : vector<17x96xf32> to vector<17x16xf32>
    "tpu.trace_start"() <{level = 10 : i32, message = "qd,kd->qk"}> : () -> ()
    %cst_24 = arith.constant dense<0.000000e+00> : vector<17x17xf32>
    %44 = tpu.matmul %41, %42, %cst_24 {dimension_numbers = #tpu.dot_dimension_numbers<[1], [1], [0], [0], [0, 0, 1, 0], [], []>} : vector<17x16xf32>, vector<17x16xf32>, vector<17x17xf32> -> vector<17x17xf32>
    "tpu.trace_stop"() : () -> ()
    %cst_25 = arith.constant 2.500000e-01 : f32
    %45 = vector.broadcast %cst_25 : f32 to vector<17x17xf32>
    %46 = arith.mulf %44, %45 : vector<17x17xf32>
    %cst_26 = arith.constant dense<0xFF800000> : vector<17xf32>
    %47 = vector.multi_reduction <maximumf>, %46, %cst_26 [1] : vector<17x17xf32> to vector<17xf32>
    %48 = vector.shape_cast %47 : vector<17xf32> to vector<17x1xf32>
    %49 = vector.broadcast %48 : vector<17x1xf32> to vector<17x17xf32>
    %50 = arith.subf %46, %49 : vector<17x17xf32>
    %51 = math.exp %50 : vector<17x17xf32>
    %cst_27 = arith.constant dense<0.000000e+00> : vector<17xf32>
    %52 = vector.multi_reduction <add>, %51, %cst_27 [1] : vector<17x17xf32> to vector<17xf32>
    %53 = vector.shape_cast %52 : vector<17xf32> to vector<17x1xf32>
    %54 = tpu.reciprocal %53 {approx = true} : vector<17x1xf32> -> vector<17x1xf32>
    %55 = vector.broadcast %54 : vector<17x1xf32> to vector<17x17xf32>
    %56 = arith.mulf %51, %55 : vector<17x17xf32>
    %cst_28 = arith.constant dense<0.000000e+00> : vector<17x16xf32>
    %57 = tpu.matmul %56, %43, %cst_28 {dimension_numbers = #tpu.dot_dimension_numbers<[1], [0], [0], [1], [0, 0, 1, 1], [], []>} : vector<17x17xf32>, vector<17x16xf32>, vector<17x16xf32> -> vector<17x16xf32>
    %c0_29 = arith.constant 0 : index
    %c0_30 = arith.constant 0 : index
    %58 = vector.load %arg8[%c0_29, %c0_30] : memref<32x48xf32, #tpu.memory_space<vmem>>, vector<16x48xf32>
    %cst_31 = arith.constant dense<0.000000e+00> : vector<17x48xf32>
    %59 = tpu.matmul %57, %58, %cst_31 {dimension_numbers = #tpu.dot_dimension_numbers<[1], [0], [0], [1], [0, 0, 1, 1], [], []>} : vector<17x16xf32>, vector<16x48xf32>, vector<17x48xf32> -> vector<17x48xf32>
    %60 = vector.broadcast %40 : vector<1x48xf32> to vector<17x48xf32>
    %61 = arith.addf %60, %59 : vector<17x48xf32>
    %62 = vector.extract_strided_slice %39 {offsets = [0, 16], sizes = [17, 16], strides = [1, 1]} : vector<17x96xf32> to vector<17x16xf32>
    %63 = vector.extract_strided_slice %39 {offsets = [0, 48], sizes = [17, 16], strides = [1, 1]} : vector<17x96xf32> to vector<17x16xf32>
    %64 = vector.extract_strided_slice %39 {offsets = [0, 80], sizes = [17, 16], strides = [1, 1]} : vector<17x96xf32> to vector<17x16xf32>
    "tpu.trace_start"() <{level = 10 : i32, message = "qd,kd->qk"}> : () -> ()
    %cst_32 = arith.constant dense<0.000000e+00> : vector<17x17xf32>
    %65 = tpu.matmul %62, %63, %cst_32 {dimension_numbers = #tpu.dot_dimension_numbers<[1], [1], [0], [0], [0, 0, 1, 0], [], []>} : vector<17x16xf32>, vector<17x16xf32>, vector<17x17xf32> -> vector<17x17xf32>
    "tpu.trace_stop"() : () -> ()
    %cst_33 = arith.constant 2.500000e-01 : f32
    %66 = vector.broadcast %cst_33 : f32 to vector<17x17xf32>
    %67 = arith.mulf %65, %66 : vector<17x17xf32>
    %cst_34 = arith.constant dense<0xFF800000> : vector<17xf32>
    %68 = vector.multi_reduction <maximumf>, %67, %cst_34 [1] : vector<17x17xf32> to vector<17xf32>
    %69 = vector.shape_cast %68 : vector<17xf32> to vector<17x1xf32>
    %70 = vector.broadcast %69 : vector<17x1xf32> to vector<17x17xf32>
    %71 = arith.subf %67, %70 : vector<17x17xf32>
    %72 = math.exp %71 : vector<17x17xf32>
    %cst_35 = arith.constant dense<0.000000e+00> : vector<17xf32>
    %73 = vector.multi_reduction <add>, %72, %cst_35 [1] : vector<17x17xf32> to vector<17xf32>
    %74 = vector.shape_cast %73 : vector<17xf32> to vector<17x1xf32>
    %75 = tpu.reciprocal %74 {approx = true} : vector<17x1xf32> -> vector<17x1xf32>
    %76 = vector.broadcast %75 : vector<17x1xf32> to vector<17x17xf32>
    %77 = arith.mulf %72, %76 : vector<17x17xf32>
    %cst_36 = arith.constant dense<0.000000e+00> : vector<17x16xf32>
    %78 = tpu.matmul %77, %64, %cst_36 {dimension_numbers = #tpu.dot_dimension_numbers<[1], [0], [0], [1], [0, 0, 1, 1], [], []>} : vector<17x17xf32>, vector<17x16xf32>, vector<17x16xf32> -> vector<17x16xf32>
    %c16 = arith.constant 16 : index
    %c0_37 = arith.constant 0 : index
    %79 = vector.load %arg8[%c16, %c0_37] : memref<32x48xf32, #tpu.memory_space<vmem>>, vector<16x48xf32>
    %cst_38 = arith.constant dense<0.000000e+00> : vector<17x48xf32>
    %80 = tpu.matmul %78, %79, %cst_38 {dimension_numbers = #tpu.dot_dimension_numbers<[1], [0], [0], [1], [0, 0, 1, 1], [], []>} : vector<17x16xf32>, vector<16x48xf32>, vector<17x48xf32> -> vector<17x48xf32>
    %81 = arith.addf %61, %80 : vector<17x48xf32>
    %82 = vector.extract_strided_slice %81 {offsets = [0, 0], sizes = [17, 32], strides = [1, 1]} : vector<17x48xf32> to vector<17x32xf32>
    %83 = vector.extract_strided_slice %81 {offsets = [0, 32], sizes = [17, 16], strides = [1, 1]} : vector<17x48xf32> to vector<17x16xf32>
    %c0_39 = arith.constant 0 : index
    %c0_40 = arith.constant 0 : index
    %84 = vector.load %arg10[%c0_39, %c0_40] : memref<16x32xf32, #tpu.memory_space<vmem>>, vector<16x32xf32>
    %cst_41 = arith.constant dense<0.000000e+00> : vector<17x32xf32>
    %85 = tpu.matmul %83, %84, %cst_41 {dimension_numbers = #tpu.dot_dimension_numbers<[1], [0], [0], [1], [0, 0, 1, 1], [], []>} : vector<17x16xf32>, vector<16x32xf32>, vector<17x32xf32> -> vector<17x32xf32>
    %86 = arith.addf %82, %85 : vector<17x32xf32>
    %87 = arith.addf %5, %86 : vector<17x32xf32>
    %c2 = arith.constant 2 : index
    %c0_42 = arith.constant 0 : index
    %88 = vector.load %arg4[%c2, %c0_42] : memref<6x32xf32, #tpu.memory_space<vmem>>, vector<1x32xf32>
    %c3 = arith.constant 3 : index
    %c0_43 = arith.constant 0 : index
    %89 = vector.load %arg4[%c3, %c0_43] : memref<6x32xf32, #tpu.memory_space<vmem>>, vector<1x32xf32>
    %cst_44 = arith.constant dense<0.000000e+00> : vector<17xf32>
    %90 = vector.multi_reduction <add>, %87, %cst_44 [1] : vector<17x32xf32> to vector<17xf32>
    %91 = vector.shape_cast %90 : vector<17xf32> to vector<17x1xf32>
    %cst_45 = arith.constant 3.200000e+01 : f32
    %92 = vector.broadcast %cst_45 : f32 to vector<17x1xf32>
    %93 = arith.divf %91, %92 : vector<17x1xf32>
    %94 = vector.broadcast %93 : vector<17x1xf32> to vector<17x32xf32>
    %95 = arith.subf %87, %94 : vector<17x32xf32>
    %96 = arith.mulf %95, %95 : vector<17x32xf32>
    %cst_46 = arith.constant dense<0.000000e+00> : vector<17xf32>
    %97 = vector.multi_reduction <add>, %96, %cst_46 [1] : vector<17x32xf32> to vector<17xf32>
    %98 = vector.shape_cast %97 : vector<17xf32> to vector<17x1xf32>
    %cst_47 = arith.constant 3.200000e+01 : f32
    %99 = vector.broadcast %cst_47 : f32 to vector<17x1xf32>
    %100 = arith.divf %98, %99 : vector<17x1xf32>
    %101 = vector.broadcast %93 : vector<17x1xf32> to vector<17x32xf32>
    %102 = arith.subf %87, %101 : vector<17x32xf32>
    %cst_48 = arith.constant 9.99999996E-13 : f32
    %103 = vector.broadcast %cst_48 : f32 to vector<17x1xf32>
    %104 = arith.addf %100, %103 : vector<17x1xf32>
    %105 = math.rsqrt %104 : vector<17x1xf32>
    %106 = vector.broadcast %105 : vector<17x1xf32> to vector<17x32xf32>
    %107 = arith.mulf %102, %106 : vector<17x32xf32>
    %108 = vector.broadcast %88 : vector<1x32xf32> to vector<17x32xf32>
    %109 = arith.mulf %107, %108 : vector<17x32xf32>
    %110 = vector.broadcast %89 : vector<1x32xf32> to vector<17x32xf32>
    %111 = arith.addf %109, %110 : vector<17x32xf32>
    %c0_49 = arith.constant 0 : index
    %c0_50 = arith.constant 0 : index
    %112 = vector.load %arg11[%c0_49, %c0_50] : memref<32x64xf32, #tpu.memory_space<vmem>>, vector<32x64xf32>
    %cst_51 = arith.constant dense<0.000000e+00> : vector<17x64xf32>
    %113 = tpu.matmul %111, %112, %cst_51 {dimension_numbers = #tpu.dot_dimension_numbers<[1], [0], [0], [1], [0, 0, 1, 1], [], []>} : vector<17x32xf32>, vector<32x64xf32>, vector<17x64xf32> -> vector<17x64xf32>
    %c0_52 = arith.constant 0 : index
    %c0_53 = arith.constant 0 : index
    %114 = vector.load %arg12[%c0_52, %c0_53] : memref<1x64xf32, #tpu.memory_space<vmem>>, vector<1x64xf32>
    %115 = vector.broadcast %114 : vector<1x64xf32> to vector<17x64xf32>
    %116 = arith.addf %113, %115 : vector<17x64xf32>
    %117 = arith.mulf %116, %116 : vector<17x64xf32>
    %118 = arith.mulf %116, %117 : vector<17x64xf32>
    %cst_54 = arith.constant 4.471500e-02 : f32
    %119 = vector.broadcast %cst_54 : f32 to vector<17x64xf32>
    %120 = arith.mulf %119, %118 : vector<17x64xf32>
    %121 = arith.addf %116, %120 : vector<17x64xf32>
    %cst_55 = arith.constant 0.797884583 : f32
    %122 = vector.broadcast %cst_55 : f32 to vector<17x64xf32>
    %123 = arith.mulf %122, %121 : vector<17x64xf32>
    %124 = math.tanh %123 : vector<17x64xf32>
    %cst_56 = arith.constant 1.000000e+00 : f32
    %125 = vector.broadcast %cst_56 : f32 to vector<17x64xf32>
    %126 = arith.addf %125, %124 : vector<17x64xf32>
    %cst_57 = arith.constant 5.000000e-01 : f32
    %127 = vector.broadcast %cst_57 : f32 to vector<17x64xf32>
    %128 = arith.mulf %127, %126 : vector<17x64xf32>
    %129 = arith.mulf %116, %128 : vector<17x64xf32>
    %c0_58 = arith.constant 0 : index
    %c0_59 = arith.constant 0 : index
    %130 = vector.load %arg13[%c0_58, %c0_59] : memref<64x32xf32, #tpu.memory_space<vmem>>, vector<64x32xf32>
    %cst_60 = arith.constant dense<0.000000e+00> : vector<17x32xf32>
    %131 = tpu.matmul %129, %130, %cst_60 {dimension_numbers = #tpu.dot_dimension_numbers<[1], [0], [0], [1], [0, 0, 1, 1], [], []>} : vector<17x64xf32>, vector<64x32xf32>, vector<17x32xf32> -> vector<17x32xf32>
    %c0_61 = arith.constant 0 : index
    %c0_62 = arith.constant 0 : index
    %132 = vector.load %arg14[%c0_61, %c0_62] : memref<1x32xf32, #tpu.memory_space<vmem>>, vector<1x32xf32>
    %133 = vector.broadcast %132 : vector<1x32xf32> to vector<17x32xf32>
    %134 = arith.addf %131, %133 : vector<17x32xf32>
    %135 = arith.addf %87, %134 : vector<17x32xf32>
    %c4 = arith.constant 4 : index
    %c0_63 = arith.constant 0 : index
    %136 = vector.load %arg4[%c4, %c0_63] : memref<6x32xf32, #tpu.memory_space<vmem>>, vector<1x32xf32>
    %c5 = arith.constant 5 : index
    %c0_64 = arith.constant 0 : index
    %137 = vector.load %arg4[%c5, %c0_64] : memref<6x32xf32, #tpu.memory_space<vmem>>, vector<1x32xf32>
    %cst_65 = arith.constant dense<0.000000e+00> : vector<17xf32>
    %138 = vector.multi_reduction <add>, %135, %cst_65 [1] : vector<17x32xf32> to vector<17xf32>
    %139 = vector.shape_cast %138 : vector<17xf32> to vector<17x1xf32>
    %cst_66 = arith.constant 3.200000e+01 : f32
    %140 = vector.broadcast %cst_66 : f32 to vector<17x1xf32>
    %141 = arith.divf %139, %140 : vector<17x1xf32>
    %142 = vector.broadcast %141 : vector<17x1xf32> to vector<17x32xf32>
    %143 = arith.subf %135, %142 : vector<17x32xf32>
    %144 = arith.mulf %143, %143 : vector<17x32xf32>
    %cst_67 = arith.constant dense<0.000000e+00> : vector<17xf32>
    %145 = vector.multi_reduction <add>, %144, %cst_67 [1] : vector<17x32xf32> to vector<17xf32>
    %146 = vector.shape_cast %145 : vector<17xf32> to vector<17x1xf32>
    %cst_68 = arith.constant 3.200000e+01 : f32
    %147 = vector.broadcast %cst_68 : f32 to vector<17x1xf32>
    %148 = arith.divf %146, %147 : vector<17x1xf32>
    %149 = vector.broadcast %141 : vector<17x1xf32> to vector<17x32xf32>
    %150 = arith.subf %135, %149 : vector<17x32xf32>
    %cst_69 = arith.constant 9.99999996E-13 : f32
    %151 = vector.broadcast %cst_69 : f32 to vector<17x1xf32>
    %152 = arith.addf %148, %151 : vector<17x1xf32>
    %153 = math.rsqrt %152 : vector<17x1xf32>
    %154 = vector.broadcast %153 : vector<17x1xf32> to vector<17x32xf32>
    %155 = arith.mulf %150, %154 : vector<17x32xf32>
    %156 = vector.broadcast %136 : vector<1x32xf32> to vector<17x32xf32>
    %157 = arith.mulf %155, %156 : vector<17x32xf32>
    %158 = vector.broadcast %137 : vector<1x32xf32> to vector<17x32xf32>
    %159 = arith.addf %157, %158 : vector<17x32xf32>
    %c0_70 = arith.constant 0 : index
    %c0_71 = arith.constant 0 : index
    %c0_72 = arith.constant 0 : index
    %160 = vector.load %arg15[%c0_70, %c0_71, %c0_72] : memref<1x17x32xf32, #tpu.memory_space<vmem>>, vector<1x17x32xf32>
    %161 = vector.shape_cast %160 : vector<1x17x32xf32> to vector<17x32xf32>
    %162 = vector.shape_cast %159 : vector<17x32xf32> to vector<1x17x32xf32>
    tpu.vector_store %arg15[%c0_70, %c0_71, %c0_72], %162 {strides = array<i32>} : memref<1x17x32xf32, #tpu.memory_space<vmem>>, vector<1x17x32xf32>,
    return
  }
  func.func @transform_0(%arg0: i32) -> (i32, i32, i32) {
    %c0_i32 = arith.constant 0 : i32
    %c0_i32_0 = arith.constant 0 : i32
    %c0_i32_1 = arith.constant 0 : i32
    return %arg0, %c0_i32, %c0_i32_0 : i32, i32, i32
  }
  func.func @transform_1(%arg0: i32) -> (i32, i32) {
    %c0_i32 = arith.constant 0 : i32
    %c0_i32_0 = arith.constant 0 : i32
    %c0_i32_1 = arith.constant 0 : i32
    return %c0_i32, %c0_i32_0 : i32, i32
  }
  func.func @transform_2(%arg0: i32) -> (i32, i32) {
    %c0_i32 = arith.constant 0 : i32
    %c0_i32_0 = arith.constant 0 : i32
    %c0_i32_1 = arith.constant 0 : i32
    return %c0_i32, %c0_i32_0 : i32, i32
  }
  func.func @transform_3(%arg0: i32) -> (i32, i32) {
    %c0_i32 = arith.constant 0 : i32
    %c0_i32_0 = arith.constant 0 : i32
    %c0_i32_1 = arith.constant 0 : i32
    return %c0_i32, %c0_i32_0 : i32, i32
  }
  func.func @transform_4(%arg0: i32) -> (i32, i32) {
    %c0_i32 = arith.constant 0 : i32
    %c0_i32_0 = arith.constant 0 : i32
    %c0_i32_1 = arith.constant 0 : i32
    return %c0_i32, %c0_i32_0 : i32, i32
  }
  func.func @transform_5(%arg0: i32) -> (i32, i32) {
    %c0_i32 = arith.constant 0 : i32
    %c0_i32_0 = arith.constant 0 : i32
    %c0_i32_1 = arith.constant 0 : i32
    return %c0_i32, %c0_i32_0 : i32, i32
  }
  func.func @transform_6(%arg0: i32) -> (i32, i32) {
    %c0_i32 = arith.constant 0 : i32
    %c0_i32_0 = arith.constant 0 : i32
    %c0_i32_1 = arith.constant 0 : i32
    return %c0_i32, %c0_i32_0 : i32, i32
  }
  func.func @transform_7(%arg0: i32) -> (i32, i32) {
    %c0_i32 = arith.constant 0 : i32
    %c0_i32_0 = arith.constant 0 : i32
    %c0_i32_1 = arith.constant 0 : i32
    return %c0_i32, %c0_i32_0 : i32, i32
  }
  func.func @transform_8(%arg0: i32) -> (i32, i32) {
    %c0_i32 = arith.constant 0 : i32
    %c0_i32_0 = arith.constant 0 : i32
    %c0_i32_1 = arith.constant 0 : i32
    return %c0_i32, %c0_i32_0 : i32, i32
  }
  func.func @transform_9(%arg0: i32) -> (i32, i32) {
    %c0_i32 = arith.constant 0 : i32
    %c0_i32_0 = arith.constant 0 : i32
    %c0_i32_1 = arith.constant 0 : i32
    return %c0_i32, %c0_i32_0 : i32, i32
  }
  func.func @transform_10(%arg0: i32) -> (i32, i32) {
    %c0_i32 = arith.constant 0 : i32
    %c0_i32_0 = arith.constant 0 : i32
    %c0_i32_1 = arith.constant 0 : i32
    return %c0_i32, %c0_i32_0 : i32, i32
  }
  func.func @transform_11(%arg0: i32) -> (i32, i32) {
    %c0_i32 = arith.constant 0 : i32
    %c0_i32_0 = arith.constant 0 : i32
    %c0_i32_1 = arith.constant 0 : i32
    return %c0_i32, %c0_i32_0 : i32, i32
  }
  func.func @transform_12(%arg0: i32) -> (i32, i32) {
    %c0_i32 = arith.constant 0 : i32
    %c0_i32_0 = arith.constant 0 : i32
    %c0_i32_1 = arith.constant 0 : i32
    return %c0_i32, %c0_i32_0 : i32, i32
  }
  func.func @transform_13(%arg0: i32) -> (i32, i32) {
    %c0_i32 = arith.constant 0 : i32
    %c0_i32_0 = arith.constant 0 : i32
    %c0_i32_1 = arith.constant 0 : i32
    return %c0_i32, %c0_i32_0 : i32, i32
  }
  func.func @transform_14(%arg0: i32) -> (i32, i32, i32) {
    %c0_i32 = arith.constant 0 : i32
    %c0_i32_0 = arith.constant 0 : i32
    %c0_i32_1 = arith.constant 0 : i32
    return %arg0, %c0_i32, %c0_i32_0 : i32, i32, i32
  }
}

</mosaic_0001>

<llo_original>
// kernel: vit_forward_fused.1
$region0: #{vit_forward_fused.1}
  #allocation0 [shape = 'u32[]', space=smem, size = 0x4, offset = 0x4, fixed_abs, tag = 'smem constant byte address 0x4 - core index']
  #allocation1 [shape = 'u32[72,128]{1,0:T(1,128)}', space=vmem, size = 0x9000, scoped, tag = 'internal scratch']
  %s0 = inlined_call_operand.vmem [shape: f32[2,17,48], index: 0, kind: input, shape index: {}]
  %s1 = inlined_call_operand.vmem [shape: f32[17,32], index: 1, kind: input, shape index: {}]
  %s2 = inlined_call_operand.vmem [shape: f32[48,32], index: 2, kind: input, shape index: {}]
  %s3 = inlined_call_operand.vmem [shape: f32[6,32], index: 3, kind: input, shape index: {}]
  %s4 = inlined_call_operand.vmem [shape: f32[32,144], index: 4, kind: input, shape index: {}]
  %s5 = inlined_call_operand.vmem [shape: f32[1,144], index: 5, kind: input, shape index: {}]
  %s6 = inlined_call_operand.vmem [shape: f32[48,96], index: 6, kind: input, shape index: {}]
  %s7 = inlined_call_operand.vmem [shape: f32[32,48], index: 7, kind: input, shape index: {}]
  %s8 = inlined_call_operand.vmem [shape: f32[1,48], index: 8, kind: input, shape index: {}]
  %s9 = inlined_call_operand.vmem [shape: f32[16,32], index: 9, kind: input, shape index: {}]
  %s10 = inlined_call_operand.vmem [shape: f32[32,64], index: 10, kind: input, shape index: {}]
  %s11 = inlined_call_operand.vmem [shape: f32[1,64], index: 11, kind: input, shape index: {}]
  %s12 = inlined_call_operand.vmem [shape: f32[64,32], index: 12, kind: input, shape index: {}]
  %s13 = inlined_call_operand.vmem [shape: f32[1,32], index: 13, kind: input, shape index: {}]
  %s14 = inlined_call_operand.vmem [shape: f32[2,17,32], index: 14, kind: output, shape index: {}]
  %s15 = sld [smem:[#allocation0]]
  $region89: #{vit_forward_fused.1} parent=0
    _
  %s17 = ssub.s32 1, %s15
  %s18 = scalar_select 0, %s17, %s15
  loop: start=0, step=1, limit=4
  $region2: #{vit_forward_fused.1} parent=0 // loop_pre_header
    _
  $region3: #{vit_forward_fused.1} parent=0 // loop_header
    %s20 = sphi 0, %s24
    %p21 = scmp.ge.s32.totalorder %s20, 4
    %s30 = sphi 0, %s32
    %s33 = sphi 0, %s30
    %s34 = sphi 0, %s33
    %s50 = sphi 0, %s34
    %s54 = sphi 0, %s54
    %s56 = sphi 0, %s54
    %s57 = sphi 0, %s56
    %s71 = sphi 0, %s57
    %s75 = sphi 0, %s75
    %s77 = sphi 0, %s75
    %s78 = sphi 0, %s77
    %s92 = sphi 0, %s78
    %s96 = sphi 0, %s96
    %s98 = sphi 0, %s96
    %s99 = sphi 0, %s98
    %s113 = sphi 0, %s99
    %s117 = sphi 0, %s117
    %s119 = sphi 0, %s117
    %s120 = sphi 0, %s119
    %s134 = sphi 0, %s120
    %s138 = sphi 0, %s138
    %s140 = sphi 0, %s138
    %s141 = sphi 0, %s140
    %s155 = sphi 0, %s141
    %s159 = sphi 0, %s159
    %s161 = sphi 0, %s159
    %s162 = sphi 0, %s161
    %s176 = sphi 0, %s162
    %s180 = sphi 0, %s180
    %s182 = sphi 0, %s180
    %s183 = sphi 0, %s182
    %s197 = sphi 0, %s183
    %s201 = sphi 0, %s201
    %s203 = sphi 0, %s201
    %s204 = sphi 0, %s203
    %s218 = sphi 0, %s204
    %s222 = sphi 0, %s222
    %s224 = sphi 0, %s222
    %s225 = sphi 0, %s224
    %s239 = sphi 0, %s225
    %s243 = sphi 0, %s243
    %s245 = sphi 0, %s243
    %s246 = sphi 0, %s245
    %s260 = sphi 0, %s246
    %s264 = sphi 0, %s264
    %s266 = sphi 0, %s264
    %s267 = sphi 0, %s266
    %s281 = sphi 0, %s267
    %s285 = sphi 0, %s285
    %s287 = sphi 0, %s285
    %s288 = sphi 0, %s287
    %s302 = sphi 0, %s288
    %s306 = sphi 0, %s306
    %s308 = sphi 0, %s306
    %s309 = sphi 0, %s308
    %s323 = sphi 0, %s309
    %s329 = sphi 0, %s331
    %s332 = sphi 0, %s329
    %s333 = sphi 0, %s332
    %s349 = sphi 0, %s333
  $region4: #{vit_forward_fused.1} parent=0 // loop_header_branch
    %23 = sbr.rel (%p21) target = $region8
  $region5: #{vit_forward_fused.1} parent=0 // loop_body
    %s25 = ssub.s32 %s20, 1
    %s26 = ssub.s32 %s20, 2
    %s27 = sadd.s32 %s20, 1
    %s28 = ssub.s32 %s20, %s27
    %p29 = scmp.eq.s32.totalorder %s28, 0
    %s31 = sadd.s32 %s30, 1
    %s32 = scalar_select %p29, %s30, %s31
    %p35 = pneg %p29
    %p36 = scmp.eq.s32.totalorder %s20, 1
    %p37 = por %p35, %p36
    %p38 = scmp.ne.s32.totalorder %s30, %s33
    %p39 = scmp.eq.s32.totalorder %s20, 0
    %p40 = por %p38, %p39
    %p41 = scmp.ne.s32.totalorder %s30, %s33
    %p42 = scmp.eq.s32.totalorder %s25, 1
    %p43 = por %p41, %p42
    %p44 = scmp.ne.s32.totalorder %s33, %s34
    %p45 = scmp.eq.s32.totalorder %s25, 0
    %p46 = por %p44, %p45
    %p47 = scmp.ne.s32.totalorder %s33, %s34
    %p48 = scmp.eq.s32.totalorder %s26, 1
    %p49 = por %p47, %p48
    %p51 = scmp.ne.s32.totalorder %s34, %s50
    %p52 = scmp.eq.s32.totalorder %s26, 0
    %p53 = por %p51, %p52
    %s55 = sadd.s32 %s54, 1
    %p58 = scmp.eq.s32.totalorder %s20, 1
    %p59 = scmp.ne.s32.totalorder %s54, %s56
    %p60 = scmp.eq.s32.totalorder %s20, 0
    %p61 = por %p59, %p60
    %p62 = scmp.ne.s32.totalorder %s54, %s56
    %p63 = scmp.eq.s32.totalorder %s25, 1
    %p64 = por %p62, %p63
    %p65 = scmp.ne.s32.totalorder %s56, %s57
    %p66 = scmp.eq.s32.totalorder %s25, 0
    %p67 = por %p65, %p66
    %p68 = scmp.ne.s32.totalorder %s56, %s57
    %p69 = scmp.eq.s32.totalorder %s26, 1
    %p70 = por %p68, %p69
    %p72 = scmp.ne.s32.totalorder %s57, %s71
    %p73 = scmp.eq.s32.totalorder %s26, 0
    %p74 = por %p72, %p73
    %s76 = sadd.s32 %s75, 1
    %p79 = scmp.eq.s32.totalorder %s20, 1
    %p80 = scmp.ne.s32.totalorder %s75, %s77
    %p81 = scmp.eq.s32.totalorder %s20, 0
    %p82 = por %p80, %p81
    %p83 = scmp.ne.s32.totalorder %s75, %s77
    %p84 = scmp.eq.s32.totalorder %s25, 1
    %p85 = por %p83, %p84
    %p86 = scmp.ne.s32.totalorder %s77, %s78
    %p87 = scmp.eq.s32.totalorder %s25, 0
    %p88 = por %p86, %p87
    %p89 = scmp.ne.s32.totalorder %s77, %s78
    %p90 = scmp.eq.s32.totalorder %s26, 1
    %p91 = por %p89, %p90
    %p93 = scmp.ne.s32.totalorder %s78, %s92
    %p94 = scmp.eq.s32.totalorder %s26, 0
    %p95 = por %p93, %p94
    %s97 = sadd.s32 %s96, 1
    %p100 = scmp.eq.s32.totalorder %s20, 1
    %p101 = scmp.ne.s32.totalorder %s96, %s98
    %p102 = scmp.eq.s32.totalorder %s20, 0
    %p103 = por %p101, %p102
    %p104 = scmp.ne.s32.totalorder %s96, %s98
    %p105 = scmp.eq.s32.totalorder %s25, 1
    %p106 = por %p104, %p105
    %p107 = scmp.ne.s32.totalorder %s98, %s99
    %p108 = scmp.eq.s32.totalorder %s25, 0
    %p109 = por %p107, %p108
    %p110 = scmp.ne.s32.totalorder %s98, %s99
    %p111 = scmp.eq.s32.totalorder %s26, 1
    %p112 = por %p110, %p111
    %p114 = scmp.ne.s32.totalorder %s99, %s113
    %p115 = scmp.eq.s32.totalorder %s26, 0
    %p116 = por %p114, %p115
    %s118 = sadd.s32 %s117, 1
    %p121 = scmp.eq.s32.totalorder %s20, 1
    %p122 = scmp.ne.s32.totalorder %s117, %s119
    %p123 = scmp.eq.s32.totalorder %s20, 0
    %p124 = por %p122, %p123
    %p125 = scmp.ne.s32.totalorder %s117, %s119
    %p126 = scmp.eq.s32.totalorder %s25, 1
    %p127 = por %p125, %p126
    %p128 = scmp.ne.s32.totalorder %s119, %s120
    %p129 = scmp.eq.s32.totalorder %s25, 0
    %p130 = por %p128, %p129
    %p131 = scmp.ne.s32.totalorder %s119, %s120
    %p132 = scmp.eq.s32.totalorder %s26, 1
    %p133 = por %p131, %p132
    %p135 = scmp.ne.s32.totalorder %s120, %s134
    %p136 = scmp.eq.s32.totalorder %s26, 0
    %p137 = por %p135, %p136
    %s139 = sadd.s32 %s138, 1
    %p142 = scmp.eq.s32.totalorder %s20, 1
    %p143 = scmp.ne.s32.totalorder %s138, %s140
    %p144 = scmp.eq.s32.totalorder %s20, 0
    %p145 = por %p143, %p144
    %p146 = scmp.ne.s32.totalorder %s138, %s140
    %p147 = scmp.eq.s32.totalorder %s25, 1
    %p148 = por %p146, %p147
    %p149 = scmp.ne.s32.totalorder %s140, %s141
    %p150 = scmp.eq.s32.totalorder %s25, 0
    %p151 = por %p149, %p150
    %p152 = scmp.ne.s32.totalorder %s140, %s141
    %p153 = scmp.eq.s32.totalorder %s26, 1
    %p154 = por %p152, %p153
    %p156 = scmp.ne.s32.totalorder %s141, %s155
    %p157 = scmp.eq.s32.totalorder %s26, 0
    %p158 = por %p156, %p157
    %s160 = sadd.s32 %s159, 1
    %p163 = scmp.eq.s32.totalorder %s20, 1
    %p164 = scmp.ne.s32.totalorder %s159, %s161
    %p165 = scmp.eq.s32.totalorder %s20, 0
    %p166 = por %p164, %p165
    %p167 = scmp.ne.s32.totalorder %s159, %s161
    %p168 = scmp.eq.s32.totalorder %s25, 1
    %p169 = por %p167, %p168
    %p170 = scmp.ne.s32.totalorder %s161, %s162
    %p171 = scmp.eq.s32.totalorder %s25, 0
    %p172 = por %p170, %p171
    %p173 = scmp.ne.s32.totalorder %s161, %s162
    %p174 = scmp.eq.s32.totalorder %s26, 1
    %p175 = por %p173, %p174
    %p177 = scmp.ne.s32.totalorder %s162, %s176
    %p178 = scmp.eq.s32.totalorder %s26, 0
    %p179 = por %p177, %p178
    %s181 = sadd.s32 %s180, 1
    %p184 = scmp.eq.s32.totalorder %s20, 1
    %p185 = scmp.ne.s32.totalorder %s180, %s182
    %p186 = scmp.eq.s32.totalorder %s20, 0
    %p187 = por %p185, %p186
    %p188 = scmp.ne.s32.totalorder %s180, %s182
    %p189 = scmp.eq.s32.totalorder %s25, 1
    %p190 = por %p188, %p189
    %p191 = scmp.ne.s32.totalorder %s182, %s183
    %p192 = scmp.eq.s32.totalorder %s25, 0
    %p193 = por %p191, %p192
    %p194 = scmp.ne.s32.totalorder %s182, %s183
    %p195 = scmp.eq.s32.totalorder %s26, 1
    %p196 = por %p194, %p195
    %p198 = scmp.ne.s32.totalorder %s183, %s197
    %p199 = scmp.eq.s32.totalorder %s26, 0
    %p200 = por %p198, %p199
    %s202 = sadd.s32 %s201, 1
    %p205 = scmp.eq.s32.totalorder %s20, 1
    %p206 = scmp.ne.s32.totalorder %s201, %s203
    %p207 = scmp.eq.s32.totalorder %s20, 0
    %p208 = por %p206, %p207
    %p209 = scmp.ne.s32.totalorder %s201, %s203
    %p210 = scmp.eq.s32.totalorder %s25, 1
    %p211 = por %p209, %p210
    %p212 = scmp.ne.s32.totalorder %s203, %s204
    %p213 = scmp.eq.s32.totalorder %s25, 0
    %p214 = por %p212, %p213
    %p215 = scmp.ne.s32.totalorder %s203, %s204
    %p216 = scmp.eq.s32.totalorder %s26, 1
    %p217 = por %p215, %p216
    %p219 = scmp.ne.s32.totalorder %s204, %s218
    %p220 = scmp.eq.s32.totalorder %s26, 0
    %p221 = por %p219, %p220
    %s223 = sadd.s32 %s222, 1
    %p226 = scmp.eq.s32.totalorder %s20, 1
    %p227 = scmp.ne.s32.totalorder %s222, %s224
    %p228 = scmp.eq.s32.totalorder %s20, 0
    %p229 = por %p227, %p228
    %p230 = scmp.ne.s32.totalorder %s222, %s224
    %p231 = scmp.eq.s32.totalorder %s25, 1
    %p232 = por %p230, %p231
    %p233 = scmp.ne.s32.totalorder %s224, %s225
    %p234 = scmp.eq.s32.totalorder %s25, 0
    %p235 = por %p233, %p234
    %p236 = scmp.ne.s32.totalorder %s224, %s225
    %p237 = scmp.eq.s32.totalorder %s26, 1
    %p238 = por %p236, %p237
    %p240 = scmp.ne.s32.totalorder %s225, %s239
    %p241 = scmp.eq.s32.totalorder %s26, 0
    %p242 = por %p240, %p241
    %s244 = sadd.s32 %s243, 1
    %p247 = scmp.eq.s32.totalorder %s20, 1
    %p248 = scmp.ne.s32.totalorder %s243, %s245
    %p249 = scmp.eq.s32.totalorder %s20, 0
    %p250 = por %p248, %p249
    %p251 = scmp.ne.s32.totalorder %s243, %s245
    %p252 = scmp.eq.s32.totalorder %s25, 1
    %p253 = por %p251, %p252
    %p254 = scmp.ne.s32.totalorder %s245, %s246
    %p255 = scmp.eq.s32.totalorder %s25, 0
    %p256 = por %p254, %p255
    %p257 = scmp.ne.s32.totalorder %s245, %s246
    %p258 = scmp.eq.s32.totalorder %s26, 1
    %p259 = por %p257, %p258
    %p261 = scmp.ne.s32.totalorder %s246, %s260
    %p262 = scmp.eq.s32.totalorder %s26, 0
    %p263 = por %p261, %p262
    %s265 = sadd.s32 %s264, 1
    %p268 = scmp.eq.s32.totalorder %s20, 1
    %p269 = scmp.ne.s32.totalorder %s264, %s266
    %p270 = scmp.eq.s32.totalorder %s20, 0
    %p271 = por %p269, %p270
    %p272 = scmp.ne.s32.totalorder %s264, %s266
    %p273 = scmp.eq.s32.totalorder %s25, 1
    %p274 = por %p272, %p273
    %p275 = scmp.ne.s32.totalorder %s266, %s267
    %p276 = scmp.eq.s32.totalorder %s25, 0
    %p277 = por %p275, %p276
    %p278 = scmp.ne.s32.totalorder %s266, %s267
    %p279 = scmp.eq.s32.totalorder %s26, 1
    %p280 = por %p278, %p279
    %p282 = scmp.ne.s32.totalorder %s267, %s281
    %p283 = scmp.eq.s32.totalorder %s26, 0
    %p284 = por %p282, %p283
    %s286 = sadd.s32 %s285, 1
    %p289 = scmp.eq.s32.totalorder %s20, 1
    %p290 = scmp.ne.s32.totalorder %s285, %s287
    %p291 = scmp.eq.s32.totalorder %s20, 0
    %p292 = por %p290, %p291
    %p293 = scmp.ne.s32.totalorder %s285, %s287
    %p294 = scmp.eq.s32.totalorder %s25, 1
    %p295 = por %p293, %p294
    %p296 = scmp.ne.s32.totalorder %s287, %s288
    %p297 = scmp.eq.s32.totalorder %s25, 0
    %p298 = por %p296, %p297
    %p299 = scmp.ne.s32.totalorder %s287, %s288
    %p300 = scmp.eq.s32.totalorder %s26, 1
    %p301 = por %p299, %p300
    %p303 = scmp.ne.s32.totalorder %s288, %s302
    %p304 = scmp.eq.s32.totalorder %s26, 0
    %p305 = por %p303, %p304
    %s307 = sadd.s32 %s306, 1
    %p310 = scmp.eq.s32.totalorder %s20, 1
    %p311 = scmp.ne.s32.totalorder %s306, %s308
    %p312 = scmp.eq.s32.totalorder %s20, 0
    %p313 = por %p311, %p312
    %p314 = scmp.ne.s32.totalorder %s306, %s308
    %p315 = scmp.eq.s32.totalorder %s25, 1
    %p316 = por %p314, %p315
    %p317 = scmp.ne.s32.totalorder %s308, %s309
    %p318 = scmp.eq.s32.totalorder %s25, 0
    %p319 = por %p317, %p318
    %p320 = scmp.ne.s32.totalorder %s308, %s309
    %p321 = scmp.eq.s32.totalorder %s26, 1
    %p322 = por %p320, %p321
    %p324 = scmp.ne.s32.totalorder %s309, %s323
    %p325 = scmp.eq.s32.totalorder %s26, 0
    %p326 = por %p324, %p325
    %s327 = ssub.s32 %s20, %s27
    %p328 = scmp.eq.s32.totalorder %s327, 0
    %s330 = sadd.s32 %s329, 1
    %s331 = scalar_select %p328, %s329, %s330
    %p334 = pneg %p328
    %p335 = scmp.eq.s32.totalorder %s20, 1
    %p336 = por %p334, %p335
    %p337 = scmp.ne.s32.totalorder %s329, %s332
    %p338 = scmp.eq.s32.totalorder %s20, 0
    %p339 = por %p337, %p338
    %p340 = scmp.ne.s32.totalorder %s329, %s332
    %p341 = scmp.eq.s32.totalorder %s25, 1
    %p342 = por %p340, %p341
    %p343 = scmp.ne.s32.totalorder %s332, %s333
    %p344 = scmp.eq.s32.totalorder %s25, 0
    %p345 = por %p343, %p344
    %p346 = scmp.ne.s32.totalorder %s332, %s333
    %p347 = scmp.eq.s32.totalorder %s26, 1
    %p348 = por %p346, %p347
    %p350 = scmp.ne.s32.totalorder %s333, %s349
    %p351 = scmp.eq.s32.totalorder %s26, 0
    %p352 = por %p350, %p351
    %p353 = scmp.le.s32.totalorder 1, %s20
    %p354 = scmp.lt.s32.totalorder %s20, 3
    %p355 = pnand %p353, %p354
    %p356 = pneg %p355
    // Predicated region
    $region9: #{vit_forward_fused.1} parent=5 // pred_check
      _
    $region10: #{vit_forward_fused.1} parent=5 // pred_check_branch
      %358 = sbr.rel (%p355) target = $region12
    $region11: #{vit_forward_fused.1} parent=5 // pred_region
      %s359 = ssub.s32 %s20, 1
      // Predicated region
      $region13: #{vit_forward_fused.1} parent=11 // pred_check
        %p360 = pneg %p67
      $region14: #{vit_forward_fused.1} parent=11 // pred_check_branch
        %362 = sbr.rel (%p360) target = $region16
      $region15: #{vit_forward_fused.1} parent=11 // pred_region
        _
      $region16: #{vit_forward_fused.1} parent=11 // pred_fallthru
        _
      // Predicated region
      $region17: #{vit_forward_fused.1} parent=11 // pred_check
        %p363 = pneg %p88
      $region18: #{vit_forward_fused.1} parent=11 // pred_check_branch
        %365 = sbr.rel (%p363) target = $region20
      $region19: #{vit_forward_fused.1} parent=11 // pred_region
        _
      $region20: #{vit_forward_fused.1} parent=11 // pred_fallthru
        _
      // Predicated region
      $region21: #{vit_forward_fused.1} parent=11 // pred_check
        %p366 = pneg %p109
      $region22: #{vit_forward_fused.1} parent=11 // pred_check_branch
        %368 = sbr.rel (%p366) target = $region24
      $region23: #{vit_forward_fused.1} parent=11 // pred_region
        _
      $region24: #{vit_forward_fused.1} parent=11 // pred_fallthru
        _
      // Predicated region
      $region25: #{vit_forward_fused.1} parent=11 // pred_check
        %p369 = pneg %p130
      $region26: #{vit_forward_fused.1} parent=11 // pred_check_branch
        %371 = sbr.rel (%p369) target = $region28
      $region27: #{vit_forward_fused.1} parent=11 // pred_region
        _
      $region28: #{vit_forward_fused.1} parent=11 // pred_fallthru
        _
      // Predicated region
      $region29: #{vit_forward_fused.1} parent=11 // pred_check
        %p372 = pneg %p151
      $region30: #{vit_forward_fused.1} parent=11 // pred_check_branch
        %374 = sbr.rel (%p372) target = $region32
      $region31: #{vit_forward_fused.1} parent=11 // pred_region
        _
      $region32: #{vit_forward_fused.1} parent=11 // pred_fallthru
        _
      // Predicated region
      $region33: #{vit_forward_fused.1} parent=11 // pred_check
        %p375 = pneg %p172
      $region34: #{vit_forward_fused.1} parent=11 // pred_check_branch
        %377 = sbr.rel (%p375) target = $region36
      $region35: #{vit_forward_fused.1} parent=11 // pred_region
        _
      $region36: #{vit_forward_fused.1} parent=11 // pred_fallthru
        _
      // Predicated region
      $region37: #{vit_forward_fused.1} parent=11 // pred_check
        %p378 = pneg %p193
      $region38: #{vit_forward_fused.1} parent=11 // pred_check_branch
        %380 = sbr.rel (%p378) target = $region40
      $region39: #{vit_forward_fused.1} parent=11 // pred_region
        _
      $region40: #{vit_forward_fused.1} parent=11 // pred_fallthru
        _
      // Predicated region
      $region41: #{vit_forward_fused.1} parent=11 // pred_check
        %p381 = pneg %p214
      $region42: #{vit_forward_fused.1} parent=11 // pred_check_branch
        %383 = sbr.rel (%p381) target = $region44
      $region43: #{vit_forward_fused.1} parent=11 // pred_region
        _
      $region44: #{vit_forward_fused.1} parent=11 // pred_fallthru
        _
      // Predicated region
      $region45: #{vit_forward_fused.1} parent=11 // pred_check
        %p384 = pneg %p235
      $region46: #{vit_forward_fused.1} parent=11 // pred_check_branch
        %386 = sbr.rel (%p384) target = $region48
      $region47: #{vit_forward_fused.1} parent=11 // pred_region
        _
      $region48: #{vit_forward_fused.1} parent=11 // pred_fallthru
        _
      // Predicated region
      $region49: #{vit_forward_fused.1} parent=11 // pred_check
        %p387 = pneg %p256
      $region50: #{vit_forward_fused.1} parent=11 // pred_check_branch
        %389 = sbr.rel (%p387) target = $region52
      $region51: #{vit_forward_fused.1} parent=11 // pred_region
        _
      $region52: #{vit_forward_fused.1} parent=11 // pred_fallthru
        _
      // Predicated region
      $region53: #{vit_forward_fused.1} parent=11 // pred_check
        %p390 = pneg %p277
      $region54: #{vit_forward_fused.1} parent=11 // pred_check_branch
        %392 = sbr.rel (%p390) target = $region56
      $region55: #{vit_forward_fused.1} parent=11 // pred_region
        _
      $region56: #{vit_forward_fused.1} parent=11 // pred_fallthru
        _
      // Predicated region
      $region57: #{vit_forward_fused.1} parent=11 // pred_check
        %p393 = pneg %p298
      $region58: #{vit_forward_fused.1} parent=11 // pred_check_branch
        %395 = sbr.rel (%p393) target = $region60
      $region59: #{vit_forward_fused.1} parent=11 // pred_region
        _
      $region60: #{vit_forward_fused.1} parent=11 // pred_fallthru
        _
      // Predicated region
      $region61: #{vit_forward_fused.1} parent=11 // pred_check
        %p396 = pneg %p319
      $region62: #{vit_forward_fused.1} parent=11 // pred_check_branch
        %398 = sbr.rel (%p396) target = $region64
      $region63: #{vit_forward_fused.1} parent=11 // pred_region
        _
      $region64: #{vit_forward_fused.1} parent=11 // pred_fallthru
        _
    $region12: #{vit_forward_fused.1} parent=5 // pred_fallthru
      _
    %p399 = scmp.lt.s32.totalorder %s20, 2
    // Predicated region
    $region65: #{vit_forward_fused.1} parent=5 // pred_check
      %p400 = pneg %p399
    $region66: #{vit_forward_fused.1} parent=5 // pred_check_branch
      %402 = sbr.rel (%p400) target = $region68
    $region67: #{vit_forward_fused.1} parent=5 // pred_region
      // Predicated region
      $region69: #{vit_forward_fused.1} parent=67 // pred_check
        %p403 = pneg %p40
      $region70: #{vit_forward_fused.1} parent=67 // pred_check_branch
        %405 = sbr.rel (%p403) target = $region72
      $region71: #{vit_forward_fused.1} parent=67 // pred_region
        %p406 = scmp.lt.s32.totalorder %s20, 1
        %s407 = scalar_select %p406, %s20, 1
        %s408 = smul.addr %s407, 3
        %s409 = smul.addr %s408, 8
        %s410 = scalar_lea.vmem %s0, %s409
      $region72: #{vit_forward_fused.1} parent=67 // pred_fallthru
        _
    $region68: #{vit_forward_fused.1} parent=5 // pred_fallthru
      _
    %p411 = scmp.le.s32.totalorder 1, %s20
    %p412 = scmp.lt.s32.totalorder %s20, 3
    %p413 = pnand %p411, %p412
    %p414 = pneg %p413
    // Predicated region
    $region73: #{vit_forward_fused.1} parent=5 // pred_check
      _
    $region74: #{vit_forward_fused.1} parent=5 // pred_check_branch
      %416 = sbr.rel (%p413) target = $region76
    $region75: #{vit_forward_fused.1} parent=5 // pred_region
      %s417 = ssub.s32 %s20, 1
      %p418 = scmp.lt.s32.totalorder %s25, 1
      %s419 = scalar_select %p418, %s25, 1
      %s420 = smul.addr %s419, 3
      %s421 = smul.addr %s420, 8
      %s422 = scalar_lea.vmem %s0, %s421
      %p423 = pneg %p46
      %p424 = pneg %p43
      %p425 = pneg %p67
      %p426 = pneg %p64
      %p427 = pneg %p88
      %p428 = pneg %p85
      %p429 = pneg %p109
      %p430 = pneg %p106
      %p431 = pneg %p130
      %p432 = pneg %p127
      %p433 = pneg %p151
      %p434 = pneg %p148
      %p435 = pneg %p172
      %p436 = pneg %p169
      %p437 = pneg %p193
      %p438 = pneg %p190
      %p439 = pneg %p214
      %p440 = pneg %p211
      %p441 = pneg %p235
      %p442 = pneg %p232
      %p443 = pneg %p256
      %p444 = pneg %p253
      %p445 = pneg %p277
      %p446 = pneg %p274
      %p447 = pneg %p298
      %p448 = pneg %p295
      %p449 = pneg %p319
      %p450 = pneg %p316
      %p451 = pneg %p345
      %p452 = pneg %p342
      %p453 = scmp.lt.s32.totalorder %s25, 1
      %s454 = scalar_select %p453, %s25, 1
      %s455 = smul.addr %s454, 3
      %s456 = smul.addr %s455, 8
      %s457 = scalar_lea.vmem %s14, %s456
      %p458 = scmp.lt.s32.totalorder %s25, 1
      %s459 = scalar_select %p458, %s25, 1
      %s460 = smul.addr %s459, 3
      %s461 = smul.addr %s460, 8
      %s462 = scalar_lea.vmem %s0, %s461
      %p463 = scmp.lt.s32.totalorder %s25, 1
      %s464 = scalar_select %p463, %s25, 1
      %s465 = smul.addr %s464, 3
      %s466 = smul.addr %s465, 8
      %s467 = scalar_lea.vmem %s14, %s466
      %v468 = vld [vmem:[%s462] sm:$0xff]
      %v469 = vld [vmem:[%s462 + $0x8] sm:$0xff]
      %v470 = vld [vmem:[%s462 + $0x10] sm:$0x1]
      %v471 = vld [vmem:[%s2] sm:$0xff]
      %v472 = vld [vmem:[%s2 + $0x8] sm:$0xff]
      %v473 = vld [vmem:[%s2 + $0x10] sm:$0xff]
      %v474 = vld [vmem:[%s2 + $0x18] sm:$0xff]
      %v475 = vld [vmem:[%s2 + $0x20] sm:$0xff]
      %v476 = vld [vmem:[%s2 + $0x28] sm:$0xff]
      %v477 = vld [vmem:[%s1] sm:$0xff]
      %v478 = vld [vmem:[%s1 + $0x8] sm:$0xff]
      %v479 = vld [vmem:[%s1 + $0x10] sm:$0x1]
      %vm480 = vcmask 392192
      %v482 = vsel %vm480, %v468, 0
      %v485 = vsel %vm480, %v469, 0
      %v488 = vsel %vm480, %v470, 0
      %490 = vmatpush.msra.mxu0 0.0
      %491 = vmatpush.msra.mxu0 0.0
      %492 = vmatpush.msra.mxu0 0.0
      %493 = vmatpush.msra.mxu0 0.0
      %494 = vmatpush.msra.mxu0 0.0
      %495 = vmatpush.msra.mxu0 0.0
      %496 = vmatpush.msra.mxu0 0.0
      %497 = vmatpush.msra.mxu0 0.0
      %498 = vmatpush.msra.mxu0 0.0
      %499 = vmatpush.msra.mxu0 0.0
      %500 = vmatpush.msra.mxu0 %v476
      %501 = vmatpush.msra.mxu0 %v475
      %502 = vmatpush.msra.mxu0 %v474
      %503 = vmatpush.msra.mxu0 %v473
      %504 = vmatpush.msra.mxu0 %v472
      %505 = vmatpush.msra.mxu0 %v471
      %506 = vmatmul.f32.gmra.mxu0 %v482
      %v507 = vpop.f32.mrf.mxu0
      %v508 = vadd.f32 %v477, %v507
      %509 = vmatmul.f32.gmra.mxu0 %v485
      %v510 = vpop.f32.mrf.mxu0
      %v511 = vadd.f32 %v478, %v510
      %512 = vmatmul.f32.gmra.mxu0 %v488
      %v513 = vpop.f32.mrf.mxu0
      %v514 = vadd.f32 %v479, %v513
      %515 = vdwg.mxu0
      %v516 = vld [vmem:[%s3] sm:$0x1]
      %v517 = vld [vmem:[%s3 + $0x1] sm:$0x1]
      %vm518 = vcmask 261120
      %v519 = vsel %vm518, %v508, 0.0
      %520 = vadd.xlane.f32.xlu0 %v519
      %v521 = vpop.xlane.xlu0 %520
      %v522 = vsel %vm518, %v511, 0.0
      %523 = vadd.xlane.f32.xlu0 %v522
      %v524 = vpop.xlane.xlu0 %523
      %vm525 = vcmask 253952
      %v526 = vsel %vm525, %v514, 0.0
      %527 = vadd.xlane.f32.xlu0 %v526
      %v528 = vpop.xlane.xlu0 %527
      %v529 = vrcp.pop 32.0
      %v530 = vmul.f32 32.0, %v529
      %v531 = vsub.f32 1.0, %v530
      %v532 = vmul.f32 %v529, %v531
      %v533 = vadd.f32 %v529, %v532
      %vm534 = vweird.f32 %v529
      %v535 = vsel %vm534, %v529, %v533
      %v536 = vmul.f32 %v521, %v535
      %v537 = vmul.f32 %v524, %v535
      %v538 = vmul.f32 %v528, %v535
      %v539 = vsub.f32 %v508, %v536
      %v540 = vsub.f32 %v511, %v537
      %v541 = vsub.f32 %v514, %v538
      %v542 = vmul.f32 %v539, %v539
      %v543 = vmul.f32 %v540, %v540
      %v544 = vmul.f32 %v541, %v541
      %v545 = vsel %vm518, %v542, 0.0
      %546 = vadd.xlane.f32.xlu0 %v545
      %v547 = vpop.xlane.xlu0 %546
      %v548 = vsel %vm518, %v543, 0.0
      %549 = vadd.xlane.f32.xlu0 %v548
      %v550 = vpop.xlane.xlu0 %549
      %v551 = vsel %vm525, %v544, 0.0
      %552 = vadd.xlane.f32.xlu0 %v551
      %v553 = vpop.xlane.xlu0 %552
      %v554 = vmul.f32 %v547, %v535
      %v555 = vmul.f32 %v550, %v535
      %v556 = vmul.f32 %v553, %v535
      %v557 = vadd.f32 %v554, 1e-12
      %v558 = vadd.f32 %v555, 1e-12
      %v559 = vadd.f32 %v556, 1e-12
      %v560 = vrsqrt.pop %v557
      %v561 = vmul.f32 %v560, %v557
      %v562 = vmul.f32 %v561, %v560
      %v563 = vmul.f32 0.5, %v562
      %v564 = vsub.f32 1.5, %v563
      %v565 = vmul.f32 %v560, %v564
      %vm566 = vweird.f32 %v557
      %vm567 = vweird.f32 %v560
      %vm568 = vmor %vm566, %vm567
      %v569 = vsel %vm568, %v560, %v565
      %v570 = vrsqrt.pop %v558
      %v571 = vmul.f32 %v570, %v558
      %v572 = vmul.f32 %v571, %v570
      %v573 = vmul.f32 0.5, %v572
      %v574 = vsub.f32 1.5, %v573
      %v575 = vmul.f32 %v570, %v574
      %vm576 = vweird.f32 %v558
      %vm577 = vweird.f32 %v570
      %vm578 = vmor %vm576, %vm577
      %v579 = vsel %vm578, %v570, %v575
      %v580 = vrsqrt.pop %v559
      %v581 = vmul.f32 %v580, %v559
      %v582 = vmul.f32 %v581, %v580
      %v583 = vmul.f32 0.5, %v582
      %v584 = vsub.f32 1.5, %v583
      %v585 = vmul.f32 %v580, %v584
      %vm586 = vweird.f32 %v559
      %vm587 = vweird.f32 %v580
      %vm588 = vmor %vm586, %vm587
      %v589 = vsel %vm588, %v580, %v585
      %v590 = vmul.f32 %v539, %v569
      %v591 = vmul.f32 %v540, %v579
      %v592 = vmul.f32 %v541, %v589
      %v593 = vperm.slane %v516, 0
      %v594 = vmul.f32 %v590, %v593
      %v595 = vmul.f32 %v591, %v593
      %v596 = vmul.f32 %v592, %v593
      %v597 = vperm.slane %v517, 0
      %v598 = vadd.f32 %v594, %v597
      %v599 = vadd.f32 %v595, %v597
      %v600 = vadd.f32 %v596, %v597
      %v601 = vld [vmem:[%s4] sm:$0xff]
      %v602 = vld [vmem:[%s4 + $0x8] sm:$0xff]
      %v603 = vld [vmem:[%s4 + $0x10] sm:$0xff]
      %v604 = vld [vmem:[%s4 + $0x18] sm:$0xff]
      %v605 = vld [vmem:[%s4 + $0x20] sm:$0xff]
      %v606 = vld [vmem:[%s4 + $0x28] sm:$0xff]
      %v607 = vld [vmem:[%s4 + $0x30] sm:$0xff]
      %v608 = vld [vmem:[%s4 + $0x38] sm:$0xff]
      %v609 = vld [vmem:[%s5] sm:$0x3]
      %v611 = vperm.slane %v609, 0
      %v612 = vperm.slane %v609, 1
      %v616 = vsel %vm518, %v598, 0
      %v619 = vsel %vm518, %v599, 0
      %v622 = vsel %vm518, %v600, 0
      %624 = vmatpush.msra.mxu0 0.0
      %625 = vmatpush.msra.mxu0 0.0
      %626 = vmatpush.msra.mxu0 0.0
      %627 = vmatpush.msra.mxu0 0.0
      %628 = vmatpush.msra.mxu0 0.0
      %629 = vmatpush.msra.mxu0 0.0
      %630 = vmatpush.msra.mxu0 0.0
      %631 = vmatpush.msra.mxu0 0.0
      %632 = vmatpush.msra.mxu0 0.0
      %633 = vmatpush.msra.mxu0 0.0
      %634 = vmatpush.msra.mxu0 0.0
      %635 = vmatpush.msra.mxu0 0.0
      %636 = vmatpush.msra.mxu0 %v607
      %637 = vmatpush.msra.mxu0 %v605
      %638 = vmatpush.msra.mxu0 %v603
      %639 = vmatpush.msra.mxu0 %v601
      %640 = vmatmul.f32.gmra.mxu0 %v616
      %v641 = vpop.f32.mrf.mxu0
      %v642 = vadd.f32 %v611, %v641
      %643 = vmatmul.f32.gmra.mxu0 %v619
      %v644 = vpop.f32.mrf.mxu0
      %v645 = vadd.f32 %v611, %v644
      %646 = vmatmul.f32.gmra.mxu0 %v622
      %v647 = vpop.f32.mrf.mxu0
      %v648 = vadd.f32 %v611, %v647
      %649 = vdwg.mxu0
      %650 = vmatpush.msra.mxu0 0.0
      %651 = vmatpush.msra.mxu0 0.0
      %652 = vmatpush.msra.mxu0 0.0
      %653 = vmatpush.msra.mxu0 0.0
      %654 = vmatpush.msra.mxu0 0.0
      %655 = vmatpush.msra.mxu0 0.0
      %656 = vmatpush.msra.mxu0 0.0
      %657 = vmatpush.msra.mxu0 0.0
      %658 = vmatpush.msra.mxu0 0.0
      %659 = vmatpush.msra.mxu0 0.0
      %660 = vmatpush.msra.mxu0 0.0
      %661 = vmatpush.msra.mxu0 0.0
      %662 = vmatpush.msra.mxu0 %v608
      %663 = vmatpush.msra.mxu0 %v606
      %664 = vmatpush.msra.mxu0 %v604
      %665 = vmatpush.msra.mxu0 %v602
      %666 = vmatmul.f32.gmra.mxu0 %v616
      %v667 = vpop.f32.mrf.mxu0
      %v668 = vadd.f32 %v612, %v667
      %669 = vmatmul.f32.gmra.mxu0 %v619
      %v670 = vpop.f32.mrf.mxu0
      %v671 = vadd.f32 %v612, %v670
      %672 = vmatmul.f32.gmra.mxu0 %v622
      %v673 = vpop.f32.mrf.mxu0
      %v674 = vadd.f32 %v612, %v673
      %675 = vdwg.mxu0
      %v676 = vld [vmem:[%s6] sm:$0xff]
      %v677 = vld [vmem:[%s6 + $0x8] sm:$0xff]
      %v678 = vld [vmem:[%s6 + $0x10] sm:$0xff]
      %v679 = vld [vmem:[%s6 + $0x18] sm:$0xff]
      %v680 = vld [vmem:[%s6 + $0x20] sm:$0xff]
      %v681 = vld [vmem:[%s6 + $0x28] sm:$0xff]
      %688 = vrot.lane.b32.xlu0 %v642, 32
      %v689 = vpop.permute.xlu0 %688
      %690 = vrot.lane.b32.xlu0 %v668, 32
      %v691 = vpop.permute.xlu0 %690
      %692 = vrot.lane.b32.xlu0 %v645, 32
      %v693 = vpop.permute.xlu0 %692
      %694 = vrot.lane.b32.xlu0 %v671, 32
      %v695 = vpop.permute.xlu0 %694
      %696 = vrot.lane.b32.xlu0 %v648, 32
      %v697 = vpop.permute.xlu0 %696
      %698 = vrot.lane.b32.xlu0 %v674, 32
      %v699 = vpop.permute.xlu0 %698
      %v700 = vsel %vm518, %v689, %v691
      %v701 = vsel %vm518, %v693, %v695
      %v702 = vsel %vm518, %v697, %v699
      %v703 = vsel %vm480, %v700, 0
      %v705 = vsel %vm480, %v701, 0
      %v707 = vsel %vm480, %v702, 0
      %709 = vmatpush.msra.mxu0 0.0
      %710 = vmatpush.msra.mxu0 0.0
      %711 = vmatpush.msra.mxu0 0.0
      %712 = vmatpush.msra.mxu0 0.0
      %713 = vmatpush.msra.mxu0 0.0
      %714 = vmatpush.msra.mxu0 0.0
      %715 = vmatpush.msra.mxu0 0.0
      %716 = vmatpush.msra.mxu0 0.0
      %717 = vmatpush.msra.mxu0 0.0
      %718 = vmatpush.msra.mxu0 0.0
      %719 = vmatpush.msra.mxu0 %v681
      %720 = vmatpush.msra.mxu0 %v680
      %721 = vmatpush.msra.mxu0 %v679
      %722 = vmatpush.msra.mxu0 %v678
      %723 = vmatpush.msra.mxu0 %v677
      %724 = vmatpush.msra.mxu0 %v676
      %725 = vmatmul.f32.gmra.mxu0 %v703
      %v726 = vpop.f32.mrf.mxu0
      %v727 = vadd.f32 0.0, %v726
      %728 = vmatmul.f32.gmra.mxu0 %v705
      %v729 = vpop.f32.mrf.mxu0
      %v730 = vadd.f32 0.0, %v729
      %731 = vmatmul.f32.gmra.mxu0 %v707
      %v732 = vpop.f32.mrf.mxu0
      %v733 = vadd.f32 0.0, %v732
      %734 = vdwg.mxu0
      %v735 = vadd.f32 %v642, %v727
      %v736 = vadd.f32 %v645, %v730
      %v737 = vadd.f32 %v648, %v733
      %v738 = vld [vmem:[%s8] sm:$0x1]
      %742 = vrot.lane.b32.xlu0 %v735, 96
      %v743 = vpop.permute.xlu0 %742
      %744 = vrot.lane.b32.xlu0 %v736, 96
      %v745 = vpop.permute.xlu0 %744
      %746 = vrot.lane.b32.xlu0 %v737, 96
      %v747 = vpop.permute.xlu0 %746
      %vm748 = vcmask 130048
      %v749 = vsel %vm748, %v735, 0
      %v751 = vsel %vm748, %v736, 0
      %v753 = vsel %vm748, %v737, 0
      %v755 = vsel %vm748, %v743, 0
      %v757 = vsel %vm748, %v745, 0
      %v759 = vsel %vm748, %v747, 0
      %761 = vmatpush.xpose.msra.mxu0 0.0
      %762 = vmatpush.xpose.msra.mxu0 0.0
      %763 = vmatpush.xpose.msra.mxu0 0.0
      %764 = vmatpush.xpose.msra.mxu0 0.0
      %765 = vmatpush.xpose.msra.mxu0 0.0
      %766 = vmatpush.xpose.msra.mxu0 0.0
      %767 = vmatpush.xpose.msra.mxu0 0.0
      %768 = vmatpush.xpose.msra.mxu0 0.0
      %769 = vmatpush.xpose.msra.mxu0 0.0
      %770 = vmatpush.xpose.msra.mxu0 0.0
      %771 = vmatpush.xpose.msra.mxu0 0.0
      %772 = vmatpush.xpose.msra.mxu0 0.0
      %773 = vmatpush.xpose.msra.mxu0 0.0
      %774 = vmatpush.xpose.msra.mxu0 %v759
      %775 = vmatpush.xpose.msra.mxu0 %v757
      %776 = vmatpush.xpose.msra.mxu0 %v755
      %777 = vmatmul.f32.gmra.mxu0 %v749
      %v778 = vpop.f32.mrf.mxu0
      %v779 = vadd.f32 0.0, %v778
      %780 = vmatmul.f32.gmra.mxu0 %v751
      %v781 = vpop.f32.mrf.mxu0
      %v782 = vadd.f32 0.0, %v781
      %783 = vmatmul.f32.gmra.mxu0 %v753
      %v784 = vpop.f32.mrf.mxu0
      %v785 = vadd.f32 0.0, %v784
      %786 = vdwg.mxu0
      %v787 = vmul.f32 %v779, 0.25
      %v788 = vmul.f32 %v782, 0.25
      %v789 = vmul.f32 %v785, 0.25
      %vm790 = vcmask 138240
      %v791 = vsel %vm790, %v787, -inf
      %792 = vmax.xlane.f32.xlu0 %v791
      %v793 = vpop.xlane.xlu0 %792
      %v794 = vsel %vm790, %v788, -inf
      %795 = vmax.xlane.f32.xlu0 %v794
      %v796 = vpop.xlane.xlu0 %795
      %vm797 = vcmask 131072
      %v798 = vsel %vm797, %v789, -inf
      %799 = vmax.xlane.f32.xlu0 %v798
      %v800 = vpop.xlane.xlu0 %799
      %v801 = vsub.f32 %v787, %v793
      %v802 = vsub.f32 %v788, %v796
      %v803 = vsub.f32 %v789, %v800
      %v804 = vmul.f32 %v801, 1.442695
      %v805 = vpow.pop %v804
      %v806 = vmul.f32 %v802, 1.442695
      %v807 = vpow.pop %v806
      %v808 = vmul.f32 %v803, 1.442695
      %v809 = vpow.pop %v808
      %v810 = vsel %vm790, %v805, 0.0
      %811 = vadd.xlane.f32.xlu0 %v810
      %v812 = vpop.xlane.xlu0 %811
      %v813 = vsel %vm790, %v807, 0.0
      %814 = vadd.xlane.f32.xlu0 %v813
      %v815 = vpop.xlane.xlu0 %814
      %v816 = vsel %vm797, %v809, 0.0
      %817 = vadd.xlane.f32.xlu0 %v816
      %v818 = vpop.xlane.xlu0 %817
      %v819 = vrcp.pop %v812
      %v820 = vrcp.pop %v815
      %v821 = vrcp.pop %v818
      %v822 = vmul.f32 %v805, %v819
      %v823 = vmul.f32 %v807, %v820
      %v824 = vmul.f32 %v809, %v821
      %825 = vrot.lane.b32.xlu0 %v735, 64
      %v826 = vpop.permute.xlu0 %825
      %827 = vrot.lane.b32.xlu0 %v736, 64
      %v828 = vpop.permute.xlu0 %827
      %829 = vrot.lane.b32.xlu0 %v737, 64
      %v830 = vpop.permute.xlu0 %829
      %v834 = vsel %vm790, %v822, 0
      %v837 = vsel %vm790, %v823, 0
      %v840 = vsel %vm790, %v824, 0
      %vm842 = vcmask 1040384
      %v843 = vsel %vm842, %v830, 0
      %845 = vmatpush.msra.mxu0 0.0
      %846 = vmatpush.msra.mxu0 0.0
      %847 = vmatpush.msra.mxu0 0.0
      %848 = vmatpush.msra.mxu0 0.0
      %849 = vmatpush.msra.mxu0 0.0
      %850 = vmatpush.msra.mxu0 0.0
      %851 = vmatpush.msra.mxu0 0.0
      %852 = vmatpush.msra.mxu0 0.0
      %853 = vmatpush.msra.mxu0 0.0
      %854 = vmatpush.msra.mxu0 0.0
      %855 = vmatpush.msra.mxu0 0.0
      %856 = vmatpush.msra.mxu0 0.0
      %857 = vmatpush.msra.mxu0 0.0
      %858 = vmatpush.msra.mxu0 %v843
      %859 = vmatpush.msra.mxu0 %v828
      %860 = vmatpush.msra.mxu0 %v826
      %861 = vmatmul.f32.gmra.mxu0 %v834
      %v862 = vpop.f32.mrf.mxu0
      %v863 = vadd.f32 0.0, %v862
      %864 = vmatmul.f32.gmra.mxu0 %v837
      %v865 = vpop.f32.mrf.mxu0
      %v866 = vadd.f32 0.0, %v865
      %867 = vmatmul.f32.gmra.mxu0 %v840
      %v868 = vpop.f32.mrf.mxu0
      %v869 = vadd.f32 0.0, %v868
      %870 = vdwg.mxu0
      %v871 = vld [vmem:[%s7] sm:$0xff]
      %v872 = vld [vmem:[%s7 + $0x8] sm:$0xff]
      %v874 = vsel %vm748, %v863, 0
      %v877 = vsel %vm748, %v866, 0
      %v880 = vsel %vm748, %v869, 0
      %882 = vmatpush.msra.mxu0 0.0
      %883 = vmatpush.msra.mxu0 0.0
      %884 = vmatpush.msra.mxu0 0.0
      %885 = vmatpush.msra.mxu0 0.0
      %886 = vmatpush.msra.mxu0 0.0
      %887 = vmatpush.msra.mxu0 0.0
      %888 = vmatpush.msra.mxu0 0.0
      %889 = vmatpush.msra.mxu0 0.0
      %890 = vmatpush.msra.mxu0 0.0
      %891 = vmatpush.msra.mxu0 0.0
      %892 = vmatpush.msra.mxu0 0.0
      %893 = vmatpush.msra.mxu0 0.0
      %894 = vmatpush.msra.mxu0 0.0
      %895 = vmatpush.msra.mxu0 0.0
      %896 = vmatpush.msra.mxu0 %v872
      %897 = vmatpush.msra.mxu0 %v871
      %898 = vmatmul.f32.gmra.mxu0 %v874
      %v899 = vpop.f32.mrf.mxu0
      %v900 = vadd.f32 0.0, %v899
      %901 = vmatmul.f32.gmra.mxu0 %v877
      %v902 = vpop.f32.mrf.mxu0
      %v903 = vadd.f32 0.0, %v902
      %904 = vmatmul.f32.gmra.mxu0 %v880
      %v905 = vpop.f32.mrf.mxu0
      %v906 = vadd.f32 0.0, %v905
      %907 = vdwg.mxu0
      %v909 = vperm.slane %v738, 0
      %v911 = vadd.f32 %v909, %v900
      %v912 = vadd.f32 %v909, %v903
      %v913 = vadd.f32 %v909, %v906
      %914 = vrot.lane.b32.xlu0 %v735, 112
      %v915 = vpop.permute.xlu0 %914
      %916 = vrot.lane.b32.xlu0 %v736, 112
      %v917 = vpop.permute.xlu0 %916
      %918 = vrot.lane.b32.xlu0 %v737, 112
      %v919 = vpop.permute.xlu0 %918
      %920 = vrot.lane.b32.xlu0 %v735, 80
      %v921 = vpop.permute.xlu0 %920
      %922 = vrot.lane.b32.xlu0 %v736, 80
      %v923 = vpop.permute.xlu0 %922
      %924 = vrot.lane.b32.xlu0 %v737, 80
      %v925 = vpop.permute.xlu0 %924
      %v926 = vsel %vm748, %v915, 0
      %v928 = vsel %vm748, %v917, 0
      %v930 = vsel %vm748, %v919, 0
      %v932 = vsel %vm748, %v921, 0
      %v934 = vsel %vm748, %v923, 0
      %v936 = vsel %vm748, %v925, 0
      %938 = vmatpush.xpose.msra.mxu0 0.0
      %939 = vmatpush.xpose.msra.mxu0 0.0
      %940 = vmatpush.xpose.msra.mxu0 0.0
      %941 = vmatpush.xpose.msra.mxu0 0.0
      %942 = vmatpush.xpose.msra.mxu0 0.0
      %943 = vmatpush.xpose.msra.mxu0 0.0
      %944 = vmatpush.xpose.msra.mxu0 0.0
      %945 = vmatpush.xpose.msra.mxu0 0.0
      %946 = vmatpush.xpose.msra.mxu0 0.0
      %947 = vmatpush.xpose.msra.mxu0 0.0
      %948 = vmatpush.xpose.msra.mxu0 0.0
      %949 = vmatpush.xpose.msra.mxu0 0.0
      %950 = vmatpush.xpose.msra.mxu0 0.0
      %951 = vmatpush.xpose.msra.mxu0 %v936
      %952 = vmatpush.xpose.msra.mxu0 %v934
      %953 = vmatpush.xpose.msra.mxu0 %v932
      %954 = vmatmul.f32.gmra.mxu0 %v926
      %v955 = vpop.f32.mrf.mxu0
      %v956 = vadd.f32 0.0, %v955
      %957 = vmatmul.f32.gmra.mxu0 %v928
      %v958 = vpop.f32.mrf.mxu0
      %v959 = vadd.f32 0.0, %v958
      %960 = vmatmul.f32.gmra.mxu0 %v930
      %v961 = vpop.f32.mrf.mxu0
      %v962 = vadd.f32 0.0, %v961
      %963 = vdwg.mxu0
      %v964 = vmul.f32 %v956, 0.25
      %v965 = vmul.f32 %v959, 0.25
      %v966 = vmul.f32 %v962, 0.25
      %v967 = vsel %vm790, %v964, -inf
      %968 = vmax.xlane.f32.xlu0 %v967
      %v969 = vpop.xlane.xlu0 %968
      %v970 = vsel %vm790, %v965, -inf
      %971 = vmax.xlane.f32.xlu0 %v970
      %v972 = vpop.xlane.xlu0 %971
      %v973 = vsel %vm797, %v966, -inf
      %974 = vmax.xlane.f32.xlu0 %v973
      %v975 = vpop.xlane.xlu0 %974
      %v976 = vsub.f32 %v964, %v969
      %v977 = vsub.f32 %v965, %v972
      %v978 = vsub.f32 %v966, %v975
      %v979 = vmul.f32 %v976, 1.442695
      %v980 = vpow.pop %v979
      %v981 = vmul.f32 %v977, 1.442695
      %v982 = vpow.pop %v981
      %v983 = vmul.f32 %v978, 1.442695
      %v984 = vpow.pop %v983
      %v985 = vsel %vm790, %v980, 0.0
      %986 = vadd.xlane.f32.xlu0 %v985
      %v987 = vpop.xlane.xlu0 %986
      %v988 = vsel %vm790, %v982, 0.0
      %989 = vadd.xlane.f32.xlu0 %v988
      %v990 = vpop.xlane.xlu0 %989
      %v991 = vsel %vm797, %v984, 0.0
      %992 = vadd.xlane.f32.xlu0 %v991
      %v993 = vpop.xlane.xlu0 %992
      %v994 = vrcp.pop %v987
      %v995 = vrcp.pop %v990
      %v996 = vrcp.pop %v993
      %v997 = vmul.f32 %v980, %v994
      %v998 = vmul.f32 %v982, %v995
      %v999 = vmul.f32 %v984, %v996
      %1000 = vrot.lane.b32.xlu0 %v735, 48
      %v1001 = vpop.permute.xlu0 %1000
      %1002 = vrot.lane.b32.xlu0 %v736, 48
      %v1003 = vpop.permute.xlu0 %1002
      %1004 = vrot.lane.b32.xlu0 %v737, 48
      %v1005 = vpop.permute.xlu0 %1004
      %v1009 = vsel %vm790, %v997, 0
      %v1012 = vsel %vm790, %v998, 0
      %v1015 = vsel %vm790, %v999, 0
      %v1017 = vsel %vm842, %v1005, 0
      %1019 = vmatpush.msra.mxu0 0.0
      %1020 = vmatpush.msra.mxu0 0.0
      %1021 = vmatpush.msra.mxu0 0.0
      %1022 = vmatpush.msra.mxu0 0.0
      %1023 = vmatpush.msra.mxu0 0.0
      %1024 = vmatpush.msra.mxu0 0.0
      %1025 = vmatpush.msra.mxu0 0.0
      %1026 = vmatpush.msra.mxu0 0.0
      %1027 = vmatpush.msra.mxu0 0.0
      %1028 = vmatpush.msra.mxu0 0.0
      %1029 = vmatpush.msra.mxu0 0.0
      %1030 = vmatpush.msra.mxu0 0.0
      %1031 = vmatpush.msra.mxu0 0.0
      %1032 = vmatpush.msra.mxu0 %v1017
      %1033 = vmatpush.msra.mxu0 %v1003
      %1034 = vmatpush.msra.mxu0 %v1001
      %1035 = vmatmul.f32.gmra.mxu0 %v1009
      %v1036 = vpop.f32.mrf.mxu0
      %v1037 = vadd.f32 0.0, %v1036
      %1038 = vmatmul.f32.gmra.mxu0 %v1012
      %v1039 = vpop.f32.mrf.mxu0
      %v1040 = vadd.f32 0.0, %v1039
      %1041 = vmatmul.f32.gmra.mxu0 %v1015
      %v1042 = vpop.f32.mrf.mxu0
      %v1043 = vadd.f32 0.0, %v1042
      %1044 = vdwg.mxu0
      %v1045 = vld [vmem:[%s7 + $0x10] sm:$0xff]
      %v1046 = vld [vmem:[%s7 + $0x18] sm:$0xff]
      %v1048 = vsel %vm748, %v1037, 0
      %v1051 = vsel %vm748, %v1040, 0
      %v1054 = vsel %vm748, %v1043, 0
      %1056 = vmatpush.msra.mxu0 0.0
      %1057 = vmatpush.msra.mxu0 0.0
      %1058 = vmatpush.msra.mxu0 0.0
      %1059 = vmatpush.msra.mxu0 0.0
      %1060 = vmatpush.msra.mxu0 0.0
      %1061 = vmatpush.msra.mxu0 0.0
      %1062 = vmatpush.msra.mxu0 0.0
      %1063 = vmatpush.msra.mxu0 0.0
      %1064 = vmatpush.msra.mxu0 0.0
      %1065 = vmatpush.msra.mxu0 0.0
      %1066 = vmatpush.msra.mxu0 0.0
      %1067 = vmatpush.msra.mxu0 0.0
      %1068 = vmatpush.msra.mxu0 0.0
      %1069 = vmatpush.msra.mxu0 0.0
      %1070 = vmatpush.msra.mxu0 %v1046
      %1071 = vmatpush.msra.mxu0 %v1045
      %1072 = vmatmul.f32.gmra.mxu0 %v1048
      %v1073 = vpop.f32.mrf.mxu0
      %v1074 = vadd.f32 0.0, %v1073
      %1075 = vmatmul.f32.gmra.mxu0 %v1051
      %v1076 = vpop.f32.mrf.mxu0
      %v1077 = vadd.f32 0.0, %v1076
      %1078 = vmatmul.f32.gmra.mxu0 %v1054
      %v1079 = vpop.f32.mrf.mxu0
      %v1080 = vadd.f32 0.0, %v1079
      %1081 = vdwg.mxu0
      %v1082 = vadd.f32 %v911, %v1074
      %v1083 = vadd.f32 %v912, %v1077
      %v1084 = vadd.f32 %v913, %v1080
      %v1085 = vld [vmem:[%s9] sm:$0xff]
      %v1086 = vld [vmem:[%s9 + $0x8] sm:$0xff]
      %1090 = vrot.lane.b32.xlu0 %v1082, 96
      %v1091 = vpop.permute.xlu0 %1090
      %1092 = vrot.lane.b32.xlu0 %v1083, 96
      %v1093 = vpop.permute.xlu0 %1092
      %1094 = vrot.lane.b32.xlu0 %v1084, 96
      %v1095 = vpop.permute.xlu0 %1094
      %v1096 = vsel %vm748, %v1091, 0
      %v1098 = vsel %vm748, %v1093, 0
      %v1100 = vsel %vm748, %v1095, 0
      %1102 = vmatpush.msra.mxu0 0.0
      %1103 = vmatpush.msra.mxu0 0.0
      %1104 = vmatpush.msra.mxu0 0.0
      %1105 = vmatpush.msra.mxu0 0.0
      %1106 = vmatpush.msra.mxu0 0.0
      %1107 = vmatpush.msra.mxu0 0.0
      %1108 = vmatpush.msra.mxu0 0.0
      %1109 = vmatpush.msra.mxu0 0.0
      %1110 = vmatpush.msra.mxu0 0.0
      %1111 = vmatpush.msra.mxu0 0.0
      %1112 = vmatpush.msra.mxu0 0.0
      %1113 = vmatpush.msra.mxu0 0.0
      %1114 = vmatpush.msra.mxu0 0.0
      %1115 = vmatpush.msra.mxu0 0.0
      %1116 = vmatpush.msra.mxu0 %v1086
      %1117 = vmatpush.msra.mxu0 %v1085
      %1118 = vmatmul.f32.gmra.mxu0 %v1096
      %v1119 = vpop.f32.mrf.mxu0
      %v1120 = vadd.f32 0.0, %v1119
      %1121 = vmatmul.f32.gmra.mxu0 %v1098
      %v1122 = vpop.f32.mrf.mxu0
      %v1123 = vadd.f32 0.0, %v1122
      %1124 = vmatmul.f32.gmra.mxu0 %v1100
      %v1125 = vpop.f32.mrf.mxu0
      %v1126 = vadd.f32 0.0, %v1125
      %1127 = vdwg.mxu0
      %v1128 = vadd.f32 %v1082, %v1120
      %v1129 = vadd.f32 %v1083, %v1123
      %v1130 = vadd.f32 %v1084, %v1126
      %v1131 = vadd.f32 %v508, %v1128
      %v1132 = vadd.f32 %v511, %v1129
      %v1133 = vadd.f32 %v514, %v1130
      %v1134 = vld [vmem:[%s3 + $0x2] sm:$0x1]
      %v1135 = vld [vmem:[%s3 + $0x3] sm:$0x1]
      %v1136 = vsel %vm518, %v1131, 0.0
      %1137 = vadd.xlane.f32.xlu0 %v1136
      %v1138 = vpop.xlane.xlu0 %1137
      %v1139 = vsel %vm518, %v1132, 0.0
      %1140 = vadd.xlane.f32.xlu0 %v1139
      %v1141 = vpop.xlane.xlu0 %1140
      %v1142 = vsel %vm525, %v1133, 0.0
      %1143 = vadd.xlane.f32.xlu0 %v1142
      %v1144 = vpop.xlane.xlu0 %1143
      %v1145 = vmul.f32 %v1138, %v535
      %v1146 = vmul.f32 %v1141, %v535
      %v1147 = vmul.f32 %v1144, %v535
      %v1148 = vsub.f32 %v1131, %v1145
      %v1149 = vsub.f32 %v1132, %v1146
      %v1150 = vsub.f32 %v1133, %v1147
      %v1151 = vmul.f32 %v1148, %v1148
      %v1152 = vmul.f32 %v1149, %v1149
      %v1153 = vmul.f32 %v1150, %v1150
      %v1154 = vsel %vm518, %v1151, 0.0
      %1155 = vadd.xlane.f32.xlu0 %v1154
      %v1156 = vpop.xlane.xlu0 %1155
      %v1157 = vsel %vm518, %v1152, 0.0
      %1158 = vadd.xlane.f32.xlu0 %v1157
      %v1159 = vpop.xlane.xlu0 %1158
      %v1160 = vsel %vm525, %v1153, 0.0
      %1161 = vadd.xlane.f32.xlu0 %v1160
      %v1162 = vpop.xlane.xlu0 %1161
      %v1163 = vmul.f32 %v1156, %v535
      %v1164 = vmul.f32 %v1159, %v535
      %v1165 = vmul.f32 %v1162, %v535
      %v1166 = vadd.f32 %v1163, 1e-12
      %v1167 = vadd.f32 %v1164, 1e-12
      %v1168 = vadd.f32 %v1165, 1e-12
      %v1169 = vrsqrt.pop %v1166
      %v1170 = vmul.f32 %v1169, %v1166
      %v1171 = vmul.f32 %v1170, %v1169
      %v1172 = vmul.f32 0.5, %v1171
      %v1173 = vsub.f32 1.5, %v1172
      %v1174 = vmul.f32 %v1169, %v1173
      %vm1175 = vweird.f32 %v1166
      %vm1176 = vweird.f32 %v1169
      %vm1177 = vmor %vm1175, %vm1176
      %v1178 = vsel %vm1177, %v1169, %v1174
      %v1179 = vrsqrt.pop %v1167
      %v1180 = vmul.f32 %v1179, %v1167
      %v1181 = vmul.f32 %v1180, %v1179
      %v1182 = vmul.f32 0.5, %v1181
      %v1183 = vsub.f32 1.5, %v1182
      %v1184 = vmul.f32 %v1179, %v1183
      %vm1185 = vweird.f32 %v1167
      %vm1186 = vweird.f32 %v1179
      %vm1187 = vmor %vm1185, %vm1186
      %v1188 = vsel %vm1187, %v1179, %v1184
      %v1189 = vrsqrt.pop %v1168
      %v1190 = vmul.f32 %v1189, %v1168
      %v1191 = vmul.f32 %v1190, %v1189
      %v1192 = vmul.f32 0.5, %v1191
      %v1193 = vsub.f32 1.5, %v1192
      %v1194 = vmul.f32 %v1189, %v1193
      %vm1195 = vweird.f32 %v1168
      %vm1196 = vweird.f32 %v1189
      %vm1197 = vmor %vm1195, %vm1196
      %v1198 = vsel %vm1197, %v1189, %v1194
      %v1199 = vmul.f32 %v1148, %v1178
      %v1200 = vmul.f32 %v1149, %v1188
      %v1201 = vmul.f32 %v1150, %v1198
      %v1202 = vperm.slane %v1134, 0
      %v1203 = vmul.f32 %v1199, %v1202
      %v1204 = vmul.f32 %v1200, %v1202
      %v1205 = vmul.f32 %v1201, %v1202
      %v1206 = vperm.slane %v1135, 0
      %v1207 = vadd.f32 %v1203, %v1206
      %v1208 = vadd.f32 %v1204, %v1206
      %v1209 = vadd.f32 %v1205, %v1206
      %v1210 = vld [vmem:[%s10] sm:$0xff]
      %v1211 = vld [vmem:[%s10 + $0x8] sm:$0xff]
      %v1212 = vld [vmem:[%s10 + $0x10] sm:$0xff]
      %v1213 = vld [vmem:[%s10 + $0x18] sm:$0xff]
      %v1214 = vld [vmem:[%s11] sm:$0x1]
      %v1216 = vperm.slane %v1214, 0
      %v1219 = vsel %vm518, %v1207, 0
      %v1222 = vsel %vm518, %v1208, 0
      %v1225 = vsel %vm518, %v1209, 0
      %1227 = vmatpush.msra.mxu0 0.0
      %1228 = vmatpush.msra.mxu0 0.0
      %1229 = vmatpush.msra.mxu0 0.0
      %1230 = vmatpush.msra.mxu0 0.0
      %1231 = vmatpush.msra.mxu0 0.0
      %1232 = vmatpush.msra.mxu0 0.0
      %1233 = vmatpush.msra.mxu0 0.0
      %1234 = vmatpush.msra.mxu0 0.0
      %1235 = vmatpush.msra.mxu0 0.0
      %1236 = vmatpush.msra.mxu0 0.0
      %1237 = vmatpush.msra.mxu0 0.0
      %1238 = vmatpush.msra.mxu0 0.0
      %1239 = vmatpush.msra.mxu0 %v1213
      %1240 = vmatpush.msra.mxu0 %v1212
      %1241 = vmatpush.msra.mxu0 %v1211
      %1242 = vmatpush.msra.mxu0 %v1210
      %1243 = vmatmul.f32.gmra.mxu0 %v1219
      %v1244 = vpop.f32.mrf.mxu0
      %v1245 = vadd.f32 %v1216, %v1244
      %1246 = vmatmul.f32.gmra.mxu0 %v1222
      %v1247 = vpop.f32.mrf.mxu0
      %v1248 = vadd.f32 %v1216, %v1247
      %1249 = vmatmul.f32.gmra.mxu0 %v1225
      %v1250 = vpop.f32.mrf.mxu0
      %v1251 = vadd.f32 %v1216, %v1250
      %1252 = vdwg.mxu0
      %v1253 = vmul.f32 %v1245, %v1245
      %v1254 = vmul.f32 %v1248, %v1248
      %v1255 = vmul.f32 %v1251, %v1251
      %v1256 = vmul.f32 %v1245, %v1253
      %v1257 = vmul.f32 %v1248, %v1254
      %v1258 = vmul.f32 %v1251, %v1255
      %v1259 = vmul.f32 %v1256, 0.044715
      %v1260 = vmul.f32 %v1257, 0.044715
      %v1261 = vmul.f32 %v1258, 0.044715
      %v1262 = vadd.f32 %v1245, %v1259
      %v1263 = vadd.f32 %v1248, %v1260
      %v1264 = vadd.f32 %v1251, %v1261
      %v1265 = vmul.f32 %v1262, 0.7978846
      %v1266 = vmul.f32 %v1263, 0.7978846
      %v1267 = vmul.f32 %v1264, 0.7978846
      %v1268 = vtanh.pop %v1265
      %v1269 = vtanh.pop %v1266
      %v1270 = vtanh.pop %v1267
      %v1271 = vadd.f32 %v1268, 1.0
      %v1272 = vadd.f32 %v1269, 1.0
      %v1273 = vadd.f32 %v1270, 1.0
      %v1274 = vmul.f32 %v1271, 0.5
      %v1275 = vmul.f32 %v1272, 0.5
      %v1276 = vmul.f32 %v1273, 0.5
      %v1277 = vmul.f32 %v1245, %v1274
      %v1278 = vmul.f32 %v1248, %v1275
      %v1279 = vmul.f32 %v1251, %v1276
      %v1280 = vld [vmem:[%s12] sm:$0xff]
      %v1281 = vld [vmem:[%s12 + $0x8] sm:$0xff]
      %v1282 = vld [vmem:[%s12 + $0x10] sm:$0xff]
      %v1283 = vld [vmem:[%s12 + $0x18] sm:$0xff]
      %v1284 = vld [vmem:[%s12 + $0x20] sm:$0xff]
      %v1285 = vld [vmem:[%s12 + $0x28] sm:$0xff]
      %v1286 = vld [vmem:[%s12 + $0x30] sm:$0xff]
      %v1287 = vld [vmem:[%s12 + $0x38] sm:$0xff]
      %v1288 = vld [vmem:[%s13] sm:$0x1]
      %v1290 = vperm.slane %v1288, 0
      %vm1292 = vcmask 523264
      %v1294 = vsel %vm1292, %v1277, 0
      %v1297 = vsel %vm1292, %v1278, 0
      %v1300 = vsel %vm1292, %v1279, 0
      %1302 = vmatpush.msra.mxu0 0.0
      %1303 = vmatpush.msra.mxu0 0.0
      %1304 = vmatpush.msra.mxu0 0.0
      %1305 = vmatpush.msra.mxu0 0.0
      %1306 = vmatpush.msra.mxu0 0.0
      %1307 = vmatpush.msra.mxu0 0.0
      %1308 = vmatpush.msra.mxu0 0.0
      %1309 = vmatpush.msra.mxu0 0.0
      %1310 = vmatpush.msra.mxu0 %v1287
      %1311 = vmatpush.msra.mxu0 %v1286
      %1312 = vmatpush.msra.mxu0 %v1285
      %1313 = vmatpush.msra.mxu0 %v1284
      %1314 = vmatpush.msra.mxu0 %v1283
      %1315 = vmatpush.msra.mxu0 %v1282
      %1316 = vmatpush.msra.mxu0 %v1281
      %1317 = vmatpush.msra.mxu0 %v1280
      %1318 = vmatmul.f32.gmra.mxu0 %v1294
      %v1319 = vpop.f32.mrf.mxu0
      %v1320 = vadd.f32 %v1290, %v1319
      %1321 = vmatmul.f32.gmra.mxu0 %v1297
      %v1322 = vpop.f32.mrf.mxu0
      %v1323 = vadd.f32 %v1290, %v1322
      %1324 = vmatmul.f32.gmra.mxu0 %v1300
      %v1325 = vpop.f32.mrf.mxu0
      %v1326 = vadd.f32 %v1290, %v1325
      %1327 = vdwg.mxu0
      %v1328 = vadd.f32 %v1131, %v1320
      %v1329 = vadd.f32 %v1132, %v1323
      %v1330 = vadd.f32 %v1133, %v1326
      %v1331 = vld [vmem:[%s3 + $0x4] sm:$0x1]
      %v1332 = vld [vmem:[%s3 + $0x5] sm:$0x1]
      %v1333 = vsel %vm518, %v1328, 0.0
      %1334 = vadd.xlane.f32.xlu0 %v1333
      %v1335 = vpop.xlane.xlu0 %1334
      %v1336 = vsel %vm518, %v1329, 0.0
      %1337 = vadd.xlane.f32.xlu0 %v1336
      %v1338 = vpop.xlane.xlu0 %1337
      %v1339 = vsel %vm525, %v1330, 0.0
      %1340 = vadd.xlane.f32.xlu0 %v1339
      %v1341 = vpop.xlane.xlu0 %1340
      %v1342 = vmul.f32 %v1335, %v535
      %v1343 = vmul.f32 %v1338, %v535
      %v1344 = vmul.f32 %v1341, %v535
      %v1345 = vsub.f32 %v1328, %v1342
      %v1346 = vsub.f32 %v1329, %v1343
      %v1347 = vsub.f32 %v1330, %v1344
      %v1348 = vmul.f32 %v1345, %v1345
      %v1349 = vmul.f32 %v1346, %v1346
      %v1350 = vmul.f32 %v1347, %v1347
      %v1351 = vsel %vm518, %v1348, 0.0
      %1352 = vadd.xlane.f32.xlu0 %v1351
      %v1353 = vpop.xlane.xlu0 %1352
      %v1354 = vsel %vm518, %v1349, 0.0
      %1355 = vadd.xlane.f32.xlu0 %v1354
      %v1356 = vpop.xlane.xlu0 %1355
      %v1357 = vsel %vm525, %v1350, 0.0
      %1358 = vadd.xlane.f32.xlu0 %v1357
      %v1359 = vpop.xlane.xlu0 %1358
      %v1360 = vmul.f32 %v1353, %v535
      %v1361 = vmul.f32 %v1356, %v535
      %v1362 = vmul.f32 %v1359, %v535
      %v1363 = vadd.f32 %v1360, 1e-12
      %v1364 = vadd.f32 %v1361, 1e-12
      %v1365 = vadd.f32 %v1362, 1e-12
      %v1366 = vrsqrt.pop %v1363
      %v1367 = vmul.f32 %v1366, %v1363
      %v1368 = vmul.f32 %v1367, %v1366
      %v1369 = vmul.f32 0.5, %v1368
      %v1370 = vsub.f32 1.5, %v1369
      %v1371 = vmul.f32 %v1366, %v1370
      %vm1372 = vweird.f32 %v1363
      %vm1373 = vweird.f32 %v1366
      %vm1374 = vmor %vm1372, %vm1373
      %v1375 = vsel %vm1374, %v1366, %v1371
      %v1376 = vrsqrt.pop %v1364
      %v1377 = vmul.f32 %v1376, %v1364
      %v1378 = vmul.f32 %v1377, %v1376
      %v1379 = vmul.f32 0.5, %v1378
      %v1380 = vsub.f32 1.5, %v1379
      %v1381 = vmul.f32 %v1376, %v1380
      %vm1382 = vweird.f32 %v1364
      %vm1383 = vweird.f32 %v1376
      %vm1384 = vmor %vm1382, %vm1383
      %v1385 = vsel %vm1384, %v1376, %v1381
      %v1386 = vrsqrt.pop %v1365
      %v1387 = vmul.f32 %v1386, %v1365
      %v1388 = vmul.f32 %v1387, %v1386
      %v1389 = vmul.f32 0.5, %v1388
      %v1390 = vsub.f32 1.5, %v1389
      %v1391 = vmul.f32 %v1386, %v1390
      %vm1392 = vweird.f32 %v1365
      %vm1393 = vweird.f32 %v1386
      %vm1394 = vmor %vm1392, %vm1393
      %v1395 = vsel %vm1394, %v1386, %v1391
      %v1396 = vmul.f32 %v1345, %v1375
      %v1397 = vmul.f32 %v1346, %v1385
      %v1398 = vmul.f32 %v1347, %v1395
      %v1399 = vperm.slane %v1331, 0
      %v1400 = vmul.f32 %v1396, %v1399
      %v1401 = vmul.f32 %v1397, %v1399
      %v1402 = vmul.f32 %v1398, %v1399
      %v1403 = vperm.slane %v1332, 0
      %v1404 = vadd.f32 %v1400, %v1403
      %v1405 = vadd.f32 %v1401, %v1403
      %v1406 = vadd.f32 %v1402, %v1403
      %1407 = vst.msk [vmem:[%s467] sm:$0xff] %vm518, %v1404
      %1408 = vst.msk [vmem:[%s467 + $0x8] sm:$0xff] %vm518, %v1405
      %1409 = vst.msk [vmem:[%s467 + $0x10] sm:$0x1] %vm525, %v1406
      %p1410 = scmp.lt.s32.totalorder %s25, 1
      %s1411 = scalar_select %p1410, %s25, 1
      %s1412 = smul.addr %s1411, 3
      %s1413 = smul.addr %s1412, 8
      %s1414 = scalar_lea.vmem %s14, %s1413
      // Predicated region
      $region77: #{vit_forward_fused.1} parent=75 // pred_check
        %p1415 = pneg %p342
      $region78: #{vit_forward_fused.1} parent=75 // pred_check_branch
        %1417 = sbr.rel (%p1415) target = $region80
      $region79: #{vit_forward_fused.1} parent=75 // pred_region
        _
      $region80: #{vit_forward_fused.1} parent=75 // pred_fallthru
        _
    $region76: #{vit_forward_fused.1} parent=5 // pred_fallthru
      _
    %p1418 = scmp.le.s32.totalorder 2, %s20
    // Predicated region
    $region81: #{vit_forward_fused.1} parent=5 // pred_check
      %p1419 = pneg %p1418
    $region82: #{vit_forward_fused.1} parent=5 // pred_check_branch
      %1421 = sbr.rel (%p1419) target = $region84
    $region83: #{vit_forward_fused.1} parent=5 // pred_region
      %s1422 = ssub.s32 %s20, 2
      // Predicated region
      $region85: #{vit_forward_fused.1} parent=83 // pred_check
        %p1423 = pneg %p348
      $region86: #{vit_forward_fused.1} parent=83 // pred_check_branch
        %1425 = sbr.rel (%p1423) target = $region88
      $region87: #{vit_forward_fused.1} parent=83 // pred_region
        %p1426 = scmp.lt.s32.totalorder %s26, 1
        %s1427 = scalar_select %p1426, %s26, 1
        %s1428 = smul.addr %s1427, 3
        %s1429 = smul.addr %s1428, 8
        %s1430 = scalar_lea.vmem %s14, %s1429
      $region88: #{vit_forward_fused.1} parent=83 // pred_fallthru
        _
    $region84: #{vit_forward_fused.1} parent=5 // pred_fallthru
      _
  $region6: #{vit_forward_fused.1} parent=0 // loop_footer
    %s24 = sadd.s32 1, %s20
  $region7: #{vit_forward_fused.1} parent=0 // loop_footer_branch
    %19 = sbr.rel target = $region3
  $region8: #{vit_forward_fused.1} parent=0 // loop_exit
    _

</llo_original>
